<compile_context>
chip_gen: v6e
topology: v6e:2x2x1
jax: 0.10.0
libtpu: 0.0.40
codegen_flags: <defaults>
</compile_context>

<pallas_src>
import jax
import jax.numpy as jnp
from jax import lax
from jax.experimental import pallas as pl
from jax.experimental.pallas import tpu as pltpu

NEG = -1e30          # mask / pad value (Python float -> inlined literal)
TOL = 1e-7           # torch_geometric topk tolerance
MIN_SCORE = 0.001    # SAGPooling(min_score=0.001)
BN_EPS = 1e-5
LN = 128             # lane width of the packed param/data slabs


def slab_offsets(dim):
    """Row offsets of each parameter block inside the packed [R, 128] param slab."""
    off = {"vec": 0}
    r = 8                                           # rows 0..7: packed row-vector params
    for name in ("wl0", "wr0", "wl1", "wr1", "wl3", "wr3", "wg"):
        off[name] = r
        r += dim
    off["w1"] = r
    r += 4 * dim
    off["w2"] = r
    r += 4 * dim
    off["rows"] = r
    return off


# ----------------------------- fused Pallas kernel -----------------------------

def make_prostate_kernel(N, DIM, B, C, off):
    NPG = N // B
    D4 = 4 * DIM

    def kernel(adj_ref, data_ref, p_ref, logits_ref, loss_ref):
        adj_mean = adj_ref[0]                 # [N, N] row-normalized mean-aggregation operator
        adj_gcn = adj_ref[1]                  # [N, N] symmetric GCN operator
        x = data_ref[0:N, 0:DIM]              # [N, DIM]  (lanes >= F_IN are zero)
        yoh = data_ref[N:N + B, :]            # [B, 128]  one-hot labels (lanes >= C are zero)

        vecs = p_ref[0:8, :]                  # [8, 128]: all row-vector params in one vreg
        bl0 = vecs[0:1, 0:DIM]
        bl1 = vecs[1:2, 0:DIM]
        bl3 = vecs[2:3, 0:DIM]
        bg = vecs[3:4, 0:DIM]                 # GCN score bias, replicated across DIM lanes
        b1 = vecs[4:5, :]
        gamma = vecs[5:6, :]
        beta = vecs[6:7, :]
        b2 = vecs[7:8, :]                     # fc2 bias; lanes >= C hold NEG (CE-safe padding)

        def w(name):
            r = off[name]
            return p_ref[r:r + DIM, 0:DIM]    # [DIM, DIM] weight block

        # SAGEConv(mean aggr): agg @ Wl^T + h @ Wr^T + bl  (two MXU pushes, no lane concat)
        def sage(h, wl, wr, bl):
            agg = jnp.dot(adj_mean, h, preferred_element_type=jnp.float32)
            return (jnp.dot(agg, w(wl), preferred_element_type=jnp.float32)
                    + jnp.dot(h, w(wr), preferred_element_type=jnp.float32) + bl)

        # global_max_pool: graphs are contiguous NPG-node blocks -> one sublane reduction
        def gmp(h):
            return jnp.max(h.reshape(B, NPG, DIM), axis=1)          # [B, DIM]

        h1 = sage(x, "wl0", "wr0", bl0)
        p0 = gmp(h1)
        h2 = sage(h1, "wl1", "wr1", bl1)
        p1 = gmp(h2)
        h3 = sage(h2, "wl3", "wr3", bl3)
        p2 = gmp(h3)

        # SAGPooling(min_score=0.001, GNN=GCNConv) fused with global_max_pool.
        # Wg is replicated over all DIM lanes host-side -> score is identical in every lane,
        # so the soft-score gating below is pure elementwise (no lane broadcast needed).
        xw = jnp.dot(h3, w("wg"), preferred_element_type=jnp.float32)              # [N, DIM]
        score = jnp.dot(adj_gcn, xw, preferred_element_type=jnp.float32) + bg      # [N, DIM]
        s_r = score.reshape(B, NPG, DIM)
        h_r = h3.reshape(B, NPG, DIM)
        mxs = jnp.max(s_r, axis=1, keepdims=True)                   # per-graph max
        e = jnp.exp(s_r - mxs)
        soft = e / jnp.sum(e, axis=1, keepdims=True)                # per-graph softmax over nodes
        thr = jnp.minimum(jnp.max(soft, axis=1, keepdims=True) - TOL, MIN_SCORE)
        keep = soft > thr                                           # top node always kept
        p3 = jnp.max(jnp.where(keep, h_r * soft, NEG), axis=1)      # [B, DIM]

        # head: fc1 consumed as four row blocks (no pooled-feature lane concat)
        w1o = off["w1"]
        h = (jnp.dot(p0, p_ref[w1o:w1o + DIM, :], preferred_element_type=jnp.float32)
             + jnp.dot(p1, p_ref[w1o + DIM:w1o + 2 * DIM, :], preferred_element_type=jnp.float32)
             + jnp.dot(p2, p_ref[w1o + 2 * DIM:w1o + 3 * DIM, :], preferred_element_type=jnp.float32)
             + jnp.dot(p3, p_ref[w1o + 3 * DIM:w1o + 4 * DIM, :], preferred_element_type=jnp.float32)
             + b1)                                                  # [B, 4*DIM] == [B, 128]

        # BatchNorm1d (training-mode batch stats, biased variance) + ReLU
        mean = jnp.mean(h, axis=0, keepdims=True)
        var = jnp.mean((h - mean) ** 2, axis=0, keepdims=True)
        h = (h - mean) * lax.rsqrt(var + BN_EPS) * gamma + beta
        h = jnp.maximum(h, 0.0)
        # TODO(synk): nn.Dropout() is stochastic in train mode; applied as identity (eval semantics).

        w2o = off["w2"]
        logits = jnp.dot(h, p_ref[w2o:w2o + D4, :], preferred_element_type=jnp.float32) + b2
        logits_ref[...] = logits                                    # [B, 128]; lanes >= C are NEG

        # cross-entropy, mean reduction (padded lanes are NEG -> exp underflows to 0)
        mxl = jnp.max(logits, axis=1, keepdims=True)
        lse = jnp.log(jnp.sum(jnp.exp(logits - mxl), axis=1, keepdims=True)) + mxl
        nll = lse - jnp.sum(yoh * logits, axis=1, keepdims=True)    # [B, 1]
        loss_ref[...] = jnp.mean(nll, axis=0, keepdims=True)        # [1, 1]

    return kernel


# ----------------------------- wrapper -----------------------------

def prostate_forward(adj_stack, data_slab, param_slab, *, N, DIM, B, C):
    assert 4 * DIM == LN, "head width must equal the 128-lane slab width"
    off = slab_offsets(DIM)
    assert param_slab.shape == (off["rows"], LN)
    kernel = make_prostate_kernel(N, DIM, B, C, off)
    vmem = pl.BlockSpec(memory_space=pltpu.MemorySpace.VMEM)
    logits_pad, loss = pl.pallas_call(
        kernel,
        out_shape=(jax.ShapeDtypeStruct((B, LN), jnp.float32),
                   jax.ShapeDtypeStruct((1, 1), jnp.float32)),
        in_specs=[vmem, vmem, vmem],
        out_specs=(vmem, vmem),
        # N is tiny here; if N scales, the dense [N,N] operators (2*N^2*4B) hit v7x's 64 MiB VMEM
        # first (~N=2k) and the adj matmuls should be tiled over a reduction grid axis or kept in
        # HBM via memory_space=pl.ANY + manual double-buffered DMA.
        compiler_params=pltpu.CompilerParams(vmem_limit_bytes=32 * 1024 * 1024),
    )(adj_stack, data_slab, param_slab)
    return logits_pad[:, :C], loss[0, 0]


# ----------------------------- main -----------------------------

if __name__ == "__main__":
    N, F_IN, DIM, C, B = 16, 8, 32, 4, 2
    NPG = N // B

    key = jax.random.PRNGKey(0)
    ks = jax.random.split(key, 12)

    x = jax.random.normal(ks[0], (N, F_IN), jnp.float32)
    batch = jnp.repeat(jnp.arange(B, dtype=jnp.int32), NPG)   # contiguous equal-size graphs
    y = jnp.array([1, 3], dtype=jnp.int32)

    # ring graph within each sub-graph (both directions)
    edges = []
    for g in range(B):
        base = g * NPG
        for i in range(NPG):
            a, b = base + i, base + (i + 1) % NPG
            edges += [(a, b), (b, a)]
    edge_index = jnp.array(edges, dtype=jnp.int32).T            # [2, E]

    # dense graph operators (host-side glue)
    A = jnp.zeros((N, N), jnp.float32).at[edge_index[1], edge_index[0]].add(1.0)
    deg = A.sum(axis=1, keepdims=True)
    adj_mean = jnp.where(deg > 0, A / jnp.maximum(deg, 1.0), 0.0)      # SAGE mean aggregation
    A_hat = A + jnp.eye(N, dtype=jnp.float32)
    dinv = 1.0 / jnp.sqrt(A_hat.sum(axis=1))
    adj_gcn = dinv[:, None] * A_hat * dinv[None, :]                    # GCN normalization

    y_onehot = (y[:, None] == jnp.arange(C, dtype=jnp.int32)[None, :]).astype(jnp.float32)

    def lin_init(k, fan_out, fan_in):
        kw, kb = jax.random.split(k)
        bound = 1.0 / float(fan_in) ** 0.5
        ww = jax.random.uniform(kw, (fan_out, fan_in), jnp.float32, -bound, bound)
        bb = jax.random.uniform(kb, (fan_out,), jnp.float32, -bound, bound)
        return ww, bb

    # SAGEConv params: lin_l (bias, aggregated neighbors), lin_r (no bias, root)
    wl0, bl0 = lin_init(ks[1], DIM, F_IN); wr0, _ = lin_init(ks[2], DIM, F_IN)
    wl1, bl1 = lin_init(ks[3], DIM, DIM);  wr1, _ = lin_init(ks[4], DIM, DIM)
    wl3, bl3 = lin_init(ks[5], DIM, DIM);  wr3, _ = lin_init(ks[6], DIM, DIM)
    wg, bg = lin_init(ks[7], 1, DIM)                 # SAGPooling scoring GNN: GCNConv(dim, 1)
    w1, b1 = lin_init(ks[8], 4 * DIM, 4 * DIM)       # head
    gamma = jnp.ones((4 * DIM,), jnp.float32)
    beta = jnp.zeros((4 * DIM,), jnp.float32)
    w2, b2 = lin_init(ks[9], C, 4 * DIM)

    # ---------------- pack inputs into 3 lane-dense slabs ----------------
    def pad_block(a, rows):
        blk = jnp.zeros((rows, LN), jnp.float32)
        return blk.at[:a.shape[0], :a.shape[1]].set(a)

    off = slab_offsets(DIM)
    vec = jnp.zeros((8, LN), jnp.float32)
    vec = vec.at[0, :DIM].set(bl0)
    vec = vec.at[1, :DIM].set(bl1)
    vec = vec.at[2, :DIM].set(bl3)
    vec = vec.at[3, :DIM].set(jnp.full((DIM,), bg[0]))            # score bias broadcast over lanes
    vec = vec.at[4, :4 * DIM].set(b1)
    vec = vec.at[5, :4 * DIM].set(gamma)
    vec = vec.at[6, :4 * DIM].set(beta)
    vec = vec.at[7, :].set(jnp.full((LN,), NEG, jnp.float32).at[:C].set(b2))   # NEG-padded fc2 bias

    param_slab = jnp.concatenate([
        vec,
        pad_block(wl0.T, DIM), pad_block(wr0.T, DIM),
        pad_block(wl1.T, DIM), pad_block(wr1.T, DIM),
        pad_block(wl3.T, DIM), pad_block(wr3.T, DIM),
        pad_block(jnp.tile(wg.T, (1, DIM)), DIM),    # score weight replicated across DIM lanes
        pad_block(w1.T, 4 * DIM),
        pad_block(w2.T, 4 * DIM),                    # zero-padded output columns beyond C
    ], axis=0)
    assert param_slab.shape[0] == off["rows"]

    data_rows = ((N + B + 7) // 8) * 8
    data_slab = jnp.zeros((data_rows, LN), jnp.float32)
    data_slab = data_slab.at[:N, :F_IN].set(x)
    data_slab = data_slab.at[N:N + B, :C].set(y_onehot)

    adj_stack = jnp.stack([adj_mean, adj_gcn], axis=0)           # [2, N, N]

    # ---------------- fused Pallas forward ----------------
    logits, loss = prostate_forward(adj_stack, data_slab, param_slab, N=N, DIM=DIM, B=B, C=C)
    jax.block_until_ready((logits, loss))

    # ---------------- pure-JAX reference check (mask-based, independent of reshape path) --------
    mask_nb = (batch[:, None] == jnp.arange(B, dtype=jnp.int32)[None, :]).astype(jnp.float32)

    def rsage(adj, hh, wlt, bl, wrt):
        return adj @ hh @ wlt + bl + hh @ wrt

    def rgmp(hh):
        return jnp.stack(
            [jnp.max(jnp.where(mask_nb[:, g:g + 1] > 0, hh, NEG), axis=0) for g in range(B)],
            axis=0)

    r_outs = []
    rh = rsage(adj_mean, x, wl0.T, bl0[None, :], wr0.T); r_outs.append(rgmp(rh))
    rh = rsage(adj_mean, rh, wl1.T, bl1[None, :], wr1.T); r_outs.append(rgmp(rh))
    rh = rsage(adj_mean, rh, wl3.T, bl3[None, :], wr3.T); r_outs.append(rgmp(rh))
    rs = adj_gcn @ (rh @ wg.T) + bg[None, :]
    rows = []
    for g in range(B):
        member = mask_nb[:, g:g + 1]
        sm = jnp.where(member > 0, rs, NEG)
        e = jnp.where(member > 0, jnp.exp(rs - jnp.max(sm)), 0.0)
        soft = e / jnp.sum(e)
        thr = jnp.minimum(jnp.max(soft) - TOL, MIN_SCORE)
        keep = jnp.logical_and(soft > thr, member > 0)
        rows.append(jnp.max(jnp.where(keep, rh * soft, NEG), axis=0))
    r_outs.append(jnp.stack(rows, axis=0))
    r_feat = jnp.concatenate(r_outs, axis=1)
    rhh = r_feat @ w1.T + b1[None, :]
    rmean = jnp.mean(rhh, axis=0, keepdims=True)
    rvar = jnp.mean((rhh - rmean) ** 2, axis=0, keepdims=True)
    rhh = jnp.maximum((rhh - rmean) / jnp.sqrt(rvar + BN_EPS) * gamma[None, :] + beta[None, :], 0.0)
    r_logits = rhh @ w2.T + b2[None, :]
    rmx = jnp.max(r_logits, axis=1, keepdims=True)
    rlse = jnp.log(jnp.sum(jnp.exp(r_logits - rmx), axis=1, keepdims=True)) + rmx
    r_loss = jnp.mean(rlse - jnp.sum(y_onehot * r_logits, axis=1, keepdims=True))

    assert jnp.allclose(logits, r_logits, atol=1e-4, rtol=1e-4), "logits mismatch"
    assert jnp.allclose(loss, r_loss, atol=1e-4, rtol=1e-4), "loss mismatch"

    print("KERNEL_OK")
</pallas_src>

<mosaic_0001>
module attributes {stable_mosaic.version = 11 : i64} {
  func.func @kernel(%arg0: memref<2x16x16xf32, #tpu.memory_space<vmem>>, %arg1: memref<24x128xf32, #tpu.memory_space<vmem>>, %arg2: memref<488x128xf32, #tpu.memory_space<vmem>>, %arg3: memref<2x128xf32, #tpu.memory_space<vmem>>, %arg4: memref<1x1xf32, #tpu.memory_space<vmem>>) attributes {dimension_semantics = [], scalar_prefetch = 0 : i64, scratch_operands = 0 : i64, tpu.core_type = #tpu.core_type<tc>} {
    %c0 = arith.constant 0 : index
    %c0_0 = arith.constant 0 : index
    %c0_1 = arith.constant 0 : index
    %0 = vector.load %arg0[%c0, %c0_0, %c0_1] : memref<2x16x16xf32, #tpu.memory_space<vmem>>, vector<1x16x16xf32>
    %1 = vector.shape_cast %0 : vector<1x16x16xf32> to vector<16x16xf32>
    %c1 = arith.constant 1 : index
    %c0_2 = arith.constant 0 : index
    %c0_3 = arith.constant 0 : index
    %2 = vector.load %arg0[%c1, %c0_2, %c0_3] : memref<2x16x16xf32, #tpu.memory_space<vmem>>, vector<1x16x16xf32>
    %3 = vector.shape_cast %2 : vector<1x16x16xf32> to vector<16x16xf32>
    %c0_4 = arith.constant 0 : index
    %c0_5 = arith.constant 0 : index
    %4 = vector.load %arg1[%c0_4, %c0_5] : memref<24x128xf32, #tpu.memory_space<vmem>>, vector<16x32xf32>
    %c16 = arith.constant 16 : index
    %c0_6 = arith.constant 0 : index
    %5 = vector.load %arg1[%c16, %c0_6] : memref<24x128xf32, #tpu.memory_space<vmem>>, vector<2x128xf32>
    %c0_7 = arith.constant 0 : index
    %c0_8 = arith.constant 0 : index
    %6 = vector.load %arg2[%c0_7, %c0_8] : memref<488x128xf32, #tpu.memory_space<vmem>>, vector<8x128xf32>
    %7 = vector.extract_strided_slice %6 {offsets = [0, 0], sizes = [1, 32], strides = [1, 1]} : vector<8x128xf32> to vector<1x32xf32>
    %8 = vector.extract_strided_slice %6 {offsets = [1, 0], sizes = [1, 32], strides = [1, 1]} : vector<8x128xf32> to vector<1x32xf32>
    %9 = vector.extract_strided_slice %6 {offsets = [2, 0], sizes = [1, 32], strides = [1, 1]} : vector<8x128xf32> to vector<1x32xf32>
    %10 = vector.extract_strided_slice %6 {offsets = [3, 0], sizes = [1, 32], strides = [1, 1]} : vector<8x128xf32> to vector<1x32xf32>
    %11 = vector.extract_strided_slice %6 {offsets = [4, 0], sizes = [1, 128], strides = [1, 1]} : vector<8x128xf32> to vector<1x128xf32>
    %12 = vector.extract_strided_slice %6 {offsets = [5, 0], sizes = [1, 128], strides = [1, 1]} : vector<8x128xf32> to vector<1x128xf32>
    %13 = vector.extract_strided_slice %6 {offsets = [6, 0], sizes = [1, 128], strides = [1, 1]} : vector<8x128xf32> to vector<1x128xf32>
    %14 = vector.extract_strided_slice %6 {offsets = [7, 0], sizes = [1, 128], strides = [1, 1]} : vector<8x128xf32> to vector<1x128xf32>
    %cst = arith.constant dense<0.000000e+00> : vector<16x32xf32>
    %15 = tpu.matmul %1, %4, %cst {dimension_numbers = #tpu.dot_dimension_numbers<[1], [0], [0], [1], [0, 0, 1, 1], [], []>} : vector<16x16xf32>, vector<16x32xf32>, vector<16x32xf32> -> vector<16x32xf32>
    %c8 = arith.constant 8 : index
    %c0_9 = arith.constant 0 : index
    %16 = vector.load %arg2[%c8, %c0_9] : memref<488x128xf32, #tpu.memory_space<vmem>>, vector<32x32xf32>
    %cst_10 = arith.constant dense<0.000000e+00> : vector<16x32xf32>
    %17 = tpu.matmul %15, %16, %cst_10 {dimension_numbers = #tpu.dot_dimension_numbers<[1], [0], [0], [1], [0, 0, 1, 1], [], []>} : vector<16x32xf32>, vector<32x32xf32>, vector<16x32xf32> -> vector<16x32xf32>
    %c40 = arith.constant 40 : index
    %c0_11 = arith.constant 0 : index
    %18 = vector.load %arg2[%c40, %c0_11] : memref<488x128xf32, #tpu.memory_space<vmem>>, vector<32x32xf32>
    %cst_12 = arith.constant dense<0.000000e+00> : vector<16x32xf32>
    %19 = tpu.matmul %4, %18, %cst_12 {dimension_numbers = #tpu.dot_dimension_numbers<[1], [0], [0], [1], [0, 0, 1, 1], [], []>} : vector<16x32xf32>, vector<32x32xf32>, vector<16x32xf32> -> vector<16x32xf32>
    %20 = arith.addf %17, %19 : vector<16x32xf32>
    %21 = vector.broadcast %7 : vector<1x32xf32> to vector<16x32xf32>
    %22 = arith.addf %20, %21 : vector<16x32xf32>
    %23 = vector.shape_cast %22 : vector<16x32xf32> to vector<2x8x32xf32>
    %cst_13 = arith.constant dense<0xFF800000> : vector<2x32xf32>
    %24 = vector.multi_reduction <maximumf>, %23, %cst_13 [1] : vector<2x8x32xf32> to vector<2x32xf32>
    %cst_14 = arith.constant dense<0.000000e+00> : vector<16x32xf32>
    %25 = tpu.matmul %1, %22, %cst_14 {dimension_numbers = #tpu.dot_dimension_numbers<[1], [0], [0], [1], [0, 0, 1, 1], [], []>} : vector<16x16xf32>, vector<16x32xf32>, vector<16x32xf32> -> vector<16x32xf32>
    %c72 = arith.constant 72 : index
    %c0_15 = arith.constant 0 : index
    %26 = vector.load %arg2[%c72, %c0_15] : memref<488x128xf32, #tpu.memory_space<vmem>>, vector<32x32xf32>
    %cst_16 = arith.constant dense<0.000000e+00> : vector<16x32xf32>
    %27 = tpu.matmul %25, %26, %cst_16 {dimension_numbers = #tpu.dot_dimension_numbers<[1], [0], [0], [1], [0, 0, 1, 1], [], []>} : vector<16x32xf32>, vector<32x32xf32>, vector<16x32xf32> -> vector<16x32xf32>
    %c104 = arith.constant 104 : index
    %c0_17 = arith.constant 0 : index
    %28 = vector.load %arg2[%c104, %c0_17] : memref<488x128xf32, #tpu.memory_space<vmem>>, vector<32x32xf32>
    %cst_18 = arith.constant dense<0.000000e+00> : vector<16x32xf32>
    %29 = tpu.matmul %22, %28, %cst_18 {dimension_numbers = #tpu.dot_dimension_numbers<[1], [0], [0], [1], [0, 0, 1, 1], [], []>} : vector<16x32xf32>, vector<32x32xf32>, vector<16x32xf32> -> vector<16x32xf32>
    %30 = arith.addf %27, %29 : vector<16x32xf32>
    %31 = vector.broadcast %8 : vector<1x32xf32> to vector<16x32xf32>
    %32 = arith.addf %30, %31 : vector<16x32xf32>
    %33 = vector.shape_cast %32 : vector<16x32xf32> to vector<2x8x32xf32>
    %cst_19 = arith.constant dense<0xFF800000> : vector<2x32xf32>
    %34 = vector.multi_reduction <maximumf>, %33, %cst_19 [1] : vector<2x8x32xf32> to vector<2x32xf32>
    %cst_20 = arith.constant dense<0.000000e+00> : vector<16x32xf32>
    %35 = tpu.matmul %1, %32, %cst_20 {dimension_numbers = #tpu.dot_dimension_numbers<[1], [0], [0], [1], [0, 0, 1, 1], [], []>} : vector<16x16xf32>, vector<16x32xf32>, vector<16x32xf32> -> vector<16x32xf32>
    %c136 = arith.constant 136 : index
    %c0_21 = arith.constant 0 : index
    %36 = vector.load %arg2[%c136, %c0_21] : memref<488x128xf32, #tpu.memory_space<vmem>>, vector<32x32xf32>
    %cst_22 = arith.constant dense<0.000000e+00> : vector<16x32xf32>
    %37 = tpu.matmul %35, %36, %cst_22 {dimension_numbers = #tpu.dot_dimension_numbers<[1], [0], [0], [1], [0, 0, 1, 1], [], []>} : vector<16x32xf32>, vector<32x32xf32>, vector<16x32xf32> -> vector<16x32xf32>
    %c168 = arith.constant 168 : index
    %c0_23 = arith.constant 0 : index
    %38 = vector.load %arg2[%c168, %c0_23] : memref<488x128xf32, #tpu.memory_space<vmem>>, vector<32x32xf32>
    %cst_24 = arith.constant dense<0.000000e+00> : vector<16x32xf32>
    %39 = tpu.matmul %32, %38, %cst_24 {dimension_numbers = #tpu.dot_dimension_numbers<[1], [0], [0], [1], [0, 0, 1, 1], [], []>} : vector<16x32xf32>, vector<32x32xf32>, vector<16x32xf32> -> vector<16x32xf32>
    %40 = arith.addf %37, %39 : vector<16x32xf32>
    %41 = vector.broadcast %9 : vector<1x32xf32> to vector<16x32xf32>
    %42 = arith.addf %40, %41 : vector<16x32xf32>
    %43 = vector.shape_cast %42 : vector<16x32xf32> to vector<2x8x32xf32>
    %cst_25 = arith.constant dense<0xFF800000> : vector<2x32xf32>
    %44 = vector.multi_reduction <maximumf>, %43, %cst_25 [1] : vector<2x8x32xf32> to vector<2x32xf32>
    %c200 = arith.constant 200 : index
    %c0_26 = arith.constant 0 : index
    %45 = vector.load %arg2[%c200, %c0_26] : memref<488x128xf32, #tpu.memory_space<vmem>>, vector<32x32xf32>
    %cst_27 = arith.constant dense<0.000000e+00> : vector<16x32xf32>
    %46 = tpu.matmul %42, %45, %cst_27 {dimension_numbers = #tpu.dot_dimension_numbers<[1], [0], [0], [1], [0, 0, 1, 1], [], []>} : vector<16x32xf32>, vector<32x32xf32>, vector<16x32xf32> -> vector<16x32xf32>
    %cst_28 = arith.constant dense<0.000000e+00> : vector<16x32xf32>
    %47 = tpu.matmul %3, %46, %cst_28 {dimension_numbers = #tpu.dot_dimension_numbers<[1], [0], [0], [1], [0, 0, 1, 1], [], []>} : vector<16x16xf32>, vector<16x32xf32>, vector<16x32xf32> -> vector<16x32xf32>
    %48 = vector.broadcast %10 : vector<1x32xf32> to vector<16x32xf32>
    %49 = arith.addf %47, %48 : vector<16x32xf32>
    %50 = vector.shape_cast %49 : vector<16x32xf32> to vector<2x8x32xf32>
    %51 = vector.shape_cast %42 : vector<16x32xf32> to vector<2x8x32xf32>
    %cst_29 = arith.constant dense<0xFF800000> : vector<2x32xf32>
    %52 = vector.multi_reduction <maximumf>, %50, %cst_29 [1] : vector<2x8x32xf32> to vector<2x32xf32>
    %53 = vector.shape_cast %52 : vector<2x32xf32> to vector<2x1x32xf32>
    %54 = vector.broadcast %53 : vector<2x1x32xf32> to vector<2x8x32xf32>
    %55 = arith.subf %50, %54 : vector<2x8x32xf32>
    %56 = math.exp %55 : vector<2x8x32xf32>
    %cst_30 = arith.constant dense<0.000000e+00> : vector<2x32xf32>
    %57 = vector.multi_reduction <add>, %56, %cst_30 [1] : vector<2x8x32xf32> to vector<2x32xf32>
    %58 = vector.shape_cast %57 : vector<2x32xf32> to vector<2x1x32xf32>
    %59 = vector.broadcast %58 : vector<2x1x32xf32> to vector<2x8x32xf32>
    %60 = arith.divf %56, %59 : vector<2x8x32xf32>
    %cst_31 = arith.constant dense<0xFF800000> : vector<2x32xf32>
    %61 = vector.multi_reduction <maximumf>, %60, %cst_31 [1] : vector<2x8x32xf32> to vector<2x32xf32>
    %62 = vector.shape_cast %61 : vector<2x32xf32> to vector<2x1x32xf32>
    %cst_32 = arith.constant 1.000000e-07 : f32
    %63 = vector.broadcast %cst_32 : f32 to vector<2x1x32xf32>
    %64 = arith.subf %62, %63 : vector<2x1x32xf32>
    %cst_33 = arith.constant 1.000000e-03 : f32
    %65 = vector.broadcast %cst_33 : f32 to vector<2x1x32xf32>
    %66 = arith.minimumf %64, %65 : vector<2x1x32xf32>
    %67 = vector.broadcast %66 : vector<2x1x32xf32> to vector<2x8x32xf32>
    %68 = arith.cmpf ogt, %60, %67 : vector<2x8x32xf32>
    %69 = arith.mulf %51, %60 : vector<2x8x32xf32>
    %cst_34 = arith.constant -1.000000e+30 : f32
    %70 = vector.broadcast %cst_34 : f32 to vector<2x8x32xf32>
    %71 = arith.select %68, %69, %70 : vector<2x8x32xi1>, vector<2x8x32xf32>
    %cst_35 = arith.constant dense<0xFF800000> : vector<2x32xf32>
    %72 = vector.multi_reduction <maximumf>, %71, %cst_35 [1] : vector<2x8x32xf32> to vector<2x32xf32>
    %c232 = arith.constant 232 : index
    %c0_36 = arith.constant 0 : index
    %73 = vector.load %arg2[%c232, %c0_36] : memref<488x128xf32, #tpu.memory_space<vmem>>, vector<32x128xf32>
    %cst_37 = arith.constant dense<0.000000e+00> : vector<2x128xf32>
    %74 = tpu.matmul %24, %73, %cst_37 {dimension_numbers = #tpu.dot_dimension_numbers<[1], [0], [0], [1], [0, 0, 1, 1], [], []>} : vector<2x32xf32>, vector<32x128xf32>, vector<2x128xf32> -> vector<2x128xf32>
    %c264 = arith.constant 264 : index
    %c0_38 = arith.constant 0 : index
    %75 = vector.load %arg2[%c264, %c0_38] : memref<488x128xf32, #tpu.memory_space<vmem>>, vector<32x128xf32>
    %cst_39 = arith.constant dense<0.000000e+00> : vector<2x128xf32>
    %76 = tpu.matmul %34, %75, %cst_39 {dimension_numbers = #tpu.dot_dimension_numbers<[1], [0], [0], [1], [0, 0, 1, 1], [], []>} : vector<2x32xf32>, vector<32x128xf32>, vector<2x128xf32> -> vector<2x128xf32>
    %77 = arith.addf %74, %76 : vector<2x128xf32>
    %c296 = arith.constant 296 : index
    %c0_40 = arith.constant 0 : index
    %78 = vector.load %arg2[%c296, %c0_40] : memref<488x128xf32, #tpu.memory_space<vmem>>, vector<32x128xf32>
    %cst_41 = arith.constant dense<0.000000e+00> : vector<2x128xf32>
    %79 = tpu.matmul %44, %78, %cst_41 {dimension_numbers = #tpu.dot_dimension_numbers<[1], [0], [0], [1], [0, 0, 1, 1], [], []>} : vector<2x32xf32>, vector<32x128xf32>, vector<2x128xf32> -> vector<2x128xf32>
    %80 = arith.addf %77, %79 : vector<2x128xf32>
    %c328 = arith.constant 328 : index
    %c0_42 = arith.constant 0 : index
    %81 = vector.load %arg2[%c328, %c0_42] : memref<488x128xf32, #tpu.memory_space<vmem>>, vector<32x128xf32>
    %cst_43 = arith.constant dense<0.000000e+00> : vector<2x128xf32>
    %82 = tpu.matmul %72, %81, %cst_43 {dimension_numbers = #tpu.dot_dimension_numbers<[1], [0], [0], [1], [0, 0, 1, 1], [], []>} : vector<2x32xf32>, vector<32x128xf32>, vector<2x128xf32> -> vector<2x128xf32>
    %83 = arith.addf %80, %82 : vector<2x128xf32>
    %84 = vector.broadcast %11 : vector<1x128xf32> to vector<2x128xf32>
    %85 = arith.addf %83, %84 : vector<2x128xf32>
    %cst_44 = arith.constant dense<0.000000e+00> : vector<128xf32>
    %86 = vector.multi_reduction <add>, %85, %cst_44 [0] : vector<2x128xf32> to vector<128xf32>
    %87 = vector.shape_cast %86 : vector<128xf32> to vector<1x128xf32>
    %cst_45 = arith.constant 2.000000e+00 : f32
    %88 = vector.broadcast %cst_45 : f32 to vector<1x128xf32>
    %89 = arith.divf %87, %88 : vector<1x128xf32>
    %90 = vector.broadcast %89 : vector<1x128xf32> to vector<2x128xf32>
    %91 = arith.subf %85, %90 : vector<2x128xf32>
    %92 = arith.mulf %91, %91 : vector<2x128xf32>
    %cst_46 = arith.constant dense<0.000000e+00> : vector<128xf32>
    %93 = vector.multi_reduction <add>, %92, %cst_46 [0] : vector<2x128xf32> to vector<128xf32>
    %94 = vector.shape_cast %93 : vector<128xf32> to vector<1x128xf32>
    %cst_47 = arith.constant 2.000000e+00 : f32
    %95 = vector.broadcast %cst_47 : f32 to vector<1x128xf32>
    %96 = arith.divf %94, %95 : vector<1x128xf32>
    %97 = vector.broadcast %89 : vector<1x128xf32> to vector<2x128xf32>
    %98 = arith.subf %85, %97 : vector<2x128xf32>
    %cst_48 = arith.constant 9.99999974E-6 : f32
    %99 = vector.broadcast %cst_48 : f32 to vector<1x128xf32>
    %100 = arith.addf %96, %99 : vector<1x128xf32>
    %101 = math.rsqrt %100 : vector<1x128xf32>
    %102 = vector.broadcast %101 : vector<1x128xf32> to vector<2x128xf32>
    %103 = arith.mulf %98, %102 : vector<2x128xf32>
    %104 = vector.broadcast %12 : vector<1x128xf32> to vector<2x128xf32>
    %105 = arith.mulf %103, %104 : vector<2x128xf32>
    %106 = vector.broadcast %13 : vector<1x128xf32> to vector<2x128xf32>
    %107 = arith.addf %105, %106 : vector<2x128xf32>
    %cst_49 = arith.constant 0.000000e+00 : f32
    %108 = vector.broadcast %cst_49 : f32 to vector<2x128xf32>
    %109 = arith.maximumf %107, %108 : vector<2x128xf32>
    %c360 = arith.constant 360 : index
    %c0_50 = arith.constant 0 : index
    %110 = vector.load %arg2[%c360, %c0_50] : memref<488x128xf32, #tpu.memory_space<vmem>>, vector<128x128xf32>
    %cst_51 = arith.constant dense<0.000000e+00> : vector<2x128xf32>
    %111 = tpu.matmul %109, %110, %cst_51 {dimension_numbers = #tpu.dot_dimension_numbers<[1], [0], [0], [1], [0, 0, 1, 1], [], []>} : vector<2x128xf32>, vector<128x128xf32>, vector<2x128xf32> -> vector<2x128xf32>
    %112 = vector.broadcast %14 : vector<1x128xf32> to vector<2x128xf32>
    %113 = arith.addf %111, %112 : vector<2x128xf32>
    %c0_52 = arith.constant 0 : index
    %c0_53 = arith.constant 0 : index
    %114 = vector.load %arg3[%c0_52, %c0_53] : memref<2x128xf32, #tpu.memory_space<vmem>>, vector<2x128xf32>
    tpu.vector_store %arg3[%c0_52, %c0_53], %113 {strides = array<i32>} : memref<2x128xf32, #tpu.memory_space<vmem>>, vector<2x128xf32>,
    %cst_54 = arith.constant dense<0xFF800000> : vector<2xf32>
    %115 = vector.multi_reduction <maximumf>, %113, %cst_54 [1] : vector<2x128xf32> to vector<2xf32>
    %116 = vector.shape_cast %115 : vector<2xf32> to vector<2x1xf32>
    %117 = vector.broadcast %116 : vector<2x1xf32> to vector<2x128xf32>
    %118 = arith.subf %113, %117 : vector<2x128xf32>
    %119 = math.exp %118 : vector<2x128xf32>
    %cst_55 = arith.constant dense<0.000000e+00> : vector<2xf32>
    %120 = vector.multi_reduction <add>, %119, %cst_55 [1] : vector<2x128xf32> to vector<2xf32>
    %121 = vector.shape_cast %120 : vector<2xf32> to vector<2x1xf32>
    %122 = math.log %121 : vector<2x1xf32>
    %123 = arith.addf %122, %116 : vector<2x1xf32>
    %124 = arith.mulf %5, %113 : vector<2x128xf32>
    %cst_56 = arith.constant dense<0.000000e+00> : vector<2xf32>
    %125 = vector.multi_reduction <add>, %124, %cst_56 [1] : vector<2x128xf32> to vector<2xf32>
    %126 = vector.shape_cast %125 : vector<2xf32> to vector<2x1xf32>
    %127 = arith.subf %123, %126 : vector<2x1xf32>
    %cst_57 = arith.constant dense<0.000000e+00> : vector<1xf32>
    %128 = vector.multi_reduction <add>, %127, %cst_57 [0] : vector<2x1xf32> to vector<1xf32>
    %129 = vector.shape_cast %128 : vector<1xf32> to vector<1x1xf32>
    %cst_58 = arith.constant 2.000000e+00 : f32
    %130 = vector.broadcast %cst_58 : f32 to vector<1x1xf32>
    %131 = arith.divf %129, %130 : vector<1x1xf32>
    %c0_59 = arith.constant 0 : index
    %c0_60 = arith.constant 0 : index
    %132 = vector.load %arg4[%c0_59, %c0_60] : memref<1x1xf32, #tpu.memory_space<vmem>>, vector<1x1xf32>
    tpu.vector_store %arg4[%c0_59, %c0_60], %131 {strides = array<i32>} : memref<1x1xf32, #tpu.memory_space<vmem>>, vector<1x1xf32>,
    return
  }
}

</mosaic_0001>

<llo_original>
// kernel: tpu_custom_call.1
$region0: #{tpu_custom_call.1}
  #allocation0 [shape = 'u32[]', space=smem, size = 0x4, offset = 0x4, fixed_abs, tag = 'smem constant byte address 0x4 - core index']
  #allocation1 [shape = 'u32[144,128]{1,0:T(1,128)}', space=vmem, size = 0x12000, scoped, tag = 'internal scratch']
  %s0 = inlined_call_operand.hbm [shape: f32[2,16,16], index: 0, kind: input, shape index: {}]
  %s1 = inlined_call_operand.hbm [shape: f32[24,128], index: 1, kind: input, shape index: {}]
  %s2 = inlined_call_operand.hbm [shape: f32[488,128], index: 2, kind: input, shape index: {}]
  %s3 = inlined_call_operand.hbm [shape: f32[2,128], index: 3, kind: output, shape index: {0}]
  %s4 = inlined_call_operand.hbm [shape: f32[1,1], index: 4, kind: output, shape index: {1}]
  %5 = xla_tuple %s3, %s4
  %s6 = sld [smem:[#allocation0]]
  $region42: #{tpu_custom_call.1} parent=0
    _
  %s8 = ssub.s32 1, %s6
  %s9 = scalar_select 0, %s8, %s6
  $region1: #{tpu_custom_call.1} parent=0
    #allocation2 [shape = 'u8[16384]{0}', space=vmem, size = 0x4000, scoped, tag = 'input window, operand 0, single buffered']
    #allocation3 [shape = 's32[1]{0}', space=sflag, size = 0x4, scoped, tag = 'scoped memory for tpu_custom_call.1']
    #allocation4 [shape = 's32[1]{0}', space=sflag, size = 0x4, scoped, tag = 'scoped memory for tpu_custom_call.1']
    #allocation5 [shape = 'u8[12288]{0}', space=vmem, size = 0x3000, scoped, tag = 'input window, operand 1, single buffered']
    #allocation6 [shape = 's32[1]{0}', space=sflag, size = 0x4, scoped, tag = 'scoped memory for tpu_custom_call.1']
    #allocation7 [shape = 'u8[249856]{0}', space=vmem, size = 0x3d000, scoped, tag = 'input window, operand 2, single buffered']
    #allocation8 [shape = 'u8[1024]{0}', space=vmem, size = 0x400, scoped, tag = 'output window, operand 0, single buffered']
    #allocation9 [shape = 'u8[512]{0}', space=vmem, size = 0x400, scoped, tag = 'output window, operand 1, single buffered']
    #allocation10 [shape = 's32[1]{0}', space=sflag, size = 0x4, scoped, tag = 'scoped memory for tpu_custom_call.1']
    %10 = vsyncpa [#allocation3], 0
    %11 = vsyncpa [#allocation6], 0
    %12 = vsyncpa [#allocation4], 0
    %13 = vsyncpa [#allocation10], 0
    // Predicated region
    $region2: #{tpu_custom_call.1} parent=1 // pred_check
      _
    $region3: #{tpu_custom_call.1} parent=1 // pred_check_branch
      %15 = sbr.rel (0) target = $region5
    $region4: #{tpu_custom_call.1} parent=1 // pred_region
      %s17 = ssub.s32 512, 512
      %18 = vsyncadd [#allocation3], %s17
      %s19 = sshll.u32 [#allocation2], 4
      %s20 = int_to_ptr.vmem [resolvable:$true] %s19
      %25 = dma.hbm_to_vmem [thread:$0]  %s0, 512, %s20, [#allocation3], 128, 128, 8
    $region5: #{tpu_custom_call.1} parent=1 // pred_fallthru
      _
    // Predicated region
    $region6: #{tpu_custom_call.1} parent=1 // pred_check
      _
    $region7: #{tpu_custom_call.1} parent=1 // pred_check_branch
      %27 = sbr.rel (0) target = $region9
    $region8: #{tpu_custom_call.1} parent=1 // pred_region
      %s29 = ssub.s32 384, 384
      %30 = vsyncadd [#allocation6], %s29
      %s31 = sshll.u32 [#allocation5], 4
      %s32 = int_to_ptr.vmem [resolvable:$true] %s31
      %37 = dma.hbm_to_vmem [thread:$0]  %s1, 384, %s32, [#allocation6], 128, 128, 8
    $region9: #{tpu_custom_call.1} parent=1 // pred_fallthru
      _
    // Predicated region
    $region10: #{tpu_custom_call.1} parent=1 // pred_check
      _
    $region11: #{tpu_custom_call.1} parent=1 // pred_check_branch
      %39 = sbr.rel (0) target = $region13
    $region12: #{tpu_custom_call.1} parent=1 // pred_region
      %s41 = ssub.s32 7808, 7808
      %42 = vsyncadd [#allocation6], %s41
      %s43 = sshll.u32 [#allocation7], 4
      %s44 = int_to_ptr.vmem [resolvable:$true] %s43
      %49 = dma.hbm_to_vmem [thread:$0]  %s2, 7808, %s44, [#allocation6], 128, 128, 8
    $region13: #{tpu_custom_call.1} parent=1 // pred_fallthru
      _
    // Predicated region
    $region14: #{tpu_custom_call.1} parent=1 // pred_check
      _
    $region15: #{tpu_custom_call.1} parent=1 // pred_check_branch
      %51 = sbr.rel (0) target = $region17
    $region16: #{tpu_custom_call.1} parent=1 // pred_region
      %52 = dma.done [#allocation3], 512
    $region17: #{tpu_custom_call.1} parent=1 // pred_fallthru
      _
    // Predicated region
    $region18: #{tpu_custom_call.1} parent=1 // pred_check
      _
    $region19: #{tpu_custom_call.1} parent=1 // pred_check_branch
      %54 = sbr.rel (0) target = $region21
    $region20: #{tpu_custom_call.1} parent=1 // pred_region
      %55 = dma.done [#allocation6], 384
    $region21: #{tpu_custom_call.1} parent=1 // pred_fallthru
      _
    // Predicated region
    $region22: #{tpu_custom_call.1} parent=1 // pred_check
      _
    $region23: #{tpu_custom_call.1} parent=1 // pred_check_branch
      %57 = sbr.rel (0) target = $region25
    $region24: #{tpu_custom_call.1} parent=1 // pred_region
      %58 = dma.done [#allocation6], 7808
    $region25: #{tpu_custom_call.1} parent=1 // pred_fallthru
      _
    %v59 = vld [vmem:[#allocation2] sm:$0xff]
    %v60 = vld [vmem:[#allocation2 + $0x8] sm:$0xff]
    %s61 = scalar_lea.vmem [#allocation2], 16
    %v62 = vld [vmem:[%s61] sm:$0xff]
    %v63 = vld [vmem:[%s61 + $0x8] sm:$0xff]
    %v64 = vld [vmem:[#allocation5] sm:$0xff]
    %v65 = vld [vmem:[#allocation5 + $0x8] sm:$0xff]
    %v66 = vld [vmem:[#allocation5 + $0x10] sm:$0x3]
    %v67 = vld [vmem:[#allocation7] sm:$0xff]
    %vm68 = vcmask 130048
    %v70 = vsel %vm68, %v59, 0
    %v73 = vsel %vm68, %v60, 0
    %75 = vmatprep.subr.mxu0 0.0
    %76 = vmatpush1.msra.mxu0 0.0
    %77 = vmatprep.subr.mxu0 0.0
    %78 = vmatpush1.msra.mxu0 0.0
    %79 = vmatprep.subr.mxu0 0.0
    %80 = vmatpush1.msra.mxu0 0.0
    %81 = vmatprep.subr.mxu0 0.0
    %82 = vmatpush1.msra.mxu0 0.0
    %83 = vmatprep.subr.mxu0 0.0
    %84 = vmatpush1.msra.mxu0 0.0
    %85 = vmatprep.subr.mxu0 0.0
    %86 = vmatpush1.msra.mxu0 0.0
    %87 = vmatprep.subr.mxu0 0.0
    %88 = vmatpush1.msra.mxu0 0.0
    %89 = vmatprep.subr.mxu0 0.0
    %90 = vmatpush1.msra.mxu0 0.0
    %91 = vmatprep.subr.mxu0 0.0
    %92 = vmatpush1.msra.mxu0 0.0
    %93 = vmatprep.subr.mxu0 0.0
    %94 = vmatpush1.msra.mxu0 0.0
    %95 = vmatprep.subr.mxu0 0.0
    %96 = vmatpush1.msra.mxu0 0.0
    %97 = vmatprep.subr.mxu0 0.0
    %98 = vmatpush1.msra.mxu0 0.0
    %99 = vmatprep.subr.mxu0 0.0
    %100 = vmatpush1.msra.mxu0 0.0
    %101 = vmatprep.subr.mxu0 0.0
    %102 = vmatpush1.msra.mxu0 0.0
    %103 = vmatprep.subr.mxu0 0.0
    %104 = vmatpush1.msra.mxu0 %v65
    %105 = vmatprep.subr.mxu0 0.0
    %106 = vmatpush1.msra.mxu0 %v64
    %107 = vmatprep.subr.mxu0 0.0
    %108 = vmatpush2.msra.mxu0 0.0
    %109 = vmatprep.subr.mxu0 0.0
    %110 = vmatpush2.msra.mxu0 0.0
    %111 = vmatprep.subr.mxu0 0.0
    %112 = vmatpush2.msra.mxu0 0.0
    %113 = vmatprep.subr.mxu0 0.0
    %114 = vmatpush2.msra.mxu0 0.0
    %115 = vmatprep.subr.mxu0 0.0
    %116 = vmatpush2.msra.mxu0 0.0
    %117 = vmatprep.subr.mxu0 0.0
    %118 = vmatpush2.msra.mxu0 0.0
    %119 = vmatprep.subr.mxu0 0.0
    %120 = vmatpush2.msra.mxu0 0.0
    %121 = vmatprep.subr.mxu0 0.0
    %122 = vmatpush2.msra.mxu0 0.0
    %123 = vmatprep.subr.mxu0 0.0
    %124 = vmatpush2.msra.mxu0 0.0
    %125 = vmatprep.subr.mxu0 0.0
    %126 = vmatpush2.msra.mxu0 0.0
    %127 = vmatprep.subr.mxu0 0.0
    %128 = vmatpush2.msra.mxu0 0.0
    %129 = vmatprep.subr.mxu0 0.0
    %130 = vmatpush2.msra.mxu0 0.0
    %131 = vmatprep.subr.mxu0 0.0
    %132 = vmatpush2.msra.mxu0 0.0
    %133 = vmatprep.subr.mxu0 0.0
    %134 = vmatpush2.msra.mxu0 0.0
    %135 = vmatprep.subr.mxu0 0.0
    %136 = vmatpush2.msra.mxu0 0.0
    %137 = vmatprep.subr.mxu0 0.0
    %138 = vmatpush2.msra.mxu0 0.0
    %139 = vmatprep.mubr.f32.mxu0 0.0
    %140 = vmatmul.mubr.f32.gmra.mxu0 %v70
    %v141 = vpop.f32.mrf.mxu0
    %v142 = vadd.f32 0.0, %v141
    %v143 = vpop.f32.mrf.mxu0
    %144 = vmatprep.mubr.f32.mxu0 0.0
    %145 = vmatmul.mubr.f32.gmra.mxu0 %v73
    %v146 = vpop.f32.mrf.mxu0
    %v147 = vadd.f32 0.0, %v146
    %v148 = vpop.f32.mrf.mxu0
    %149 = vdwg.mxu0
    %v150 = vld [vmem:[#allocation7 + $0x8] sm:$0xff]
    %v151 = vld [vmem:[#allocation7 + $0x10] sm:$0xff]
    %v152 = vld [vmem:[#allocation7 + $0x18] sm:$0xff]
    %v153 = vld [vmem:[#allocation7 + $0x20] sm:$0xff]
    %v154 = vld [vmem:[#allocation7 + $0x28] sm:$0xff]
    %v155 = vld [vmem:[#allocation7 + $0x30] sm:$0xff]
    %v156 = vld [vmem:[#allocation7 + $0x38] sm:$0xff]
    %v157 = vld [vmem:[#allocation7 + $0x40] sm:$0xff]
    %vm158 = vcmask 261120
    %v160 = vsel %vm158, %v64, 0
    %v163 = vsel %vm158, %v65, 0
    %165 = vmatprep.subr.mxu0 0.0
    %166 = vmatpush1.msra.mxu0 0.0
    %167 = vmatprep.subr.mxu0 0.0
    %168 = vmatpush1.msra.mxu0 0.0
    %169 = vmatprep.subr.mxu0 0.0
    %170 = vmatpush1.msra.mxu0 0.0
    %171 = vmatprep.subr.mxu0 0.0
    %172 = vmatpush1.msra.mxu0 0.0
    %173 = vmatprep.subr.mxu0 0.0
    %174 = vmatpush1.msra.mxu0 0.0
    %175 = vmatprep.subr.mxu0 0.0
    %176 = vmatpush1.msra.mxu0 0.0
    %177 = vmatprep.subr.mxu0 0.0
    %178 = vmatpush1.msra.mxu0 0.0
    %179 = vmatprep.subr.mxu0 0.0
    %180 = vmatpush1.msra.mxu0 0.0
    %181 = vmatprep.subr.mxu0 0.0
    %182 = vmatpush1.msra.mxu0 0.0
    %183 = vmatprep.subr.mxu0 0.0
    %184 = vmatpush1.msra.mxu0 0.0
    %185 = vmatprep.subr.mxu0 0.0
    %186 = vmatpush1.msra.mxu0 0.0
    %187 = vmatprep.subr.mxu0 0.0
    %188 = vmatpush1.msra.mxu0 0.0
    %189 = vmatprep.subr.mxu0 0.0
    %190 = vmatpush1.msra.mxu0 %v157
    %191 = vmatprep.subr.mxu0 0.0
    %192 = vmatpush1.msra.mxu0 %v156
    %193 = vmatprep.subr.mxu0 0.0
    %194 = vmatpush1.msra.mxu0 %v155
    %195 = vmatprep.subr.mxu0 0.0
    %196 = vmatpush1.msra.mxu0 %v154
    %197 = vmatprep.subr.mxu0 0.0
    %198 = vmatpush2.msra.mxu0 0.0
    %199 = vmatprep.subr.mxu0 0.0
    %200 = vmatpush2.msra.mxu0 0.0
    %201 = vmatprep.subr.mxu0 0.0
    %202 = vmatpush2.msra.mxu0 0.0
    %203 = vmatprep.subr.mxu0 0.0
    %204 = vmatpush2.msra.mxu0 0.0
    %205 = vmatprep.subr.mxu0 0.0
    %206 = vmatpush2.msra.mxu0 0.0
    %207 = vmatprep.subr.mxu0 0.0
    %208 = vmatpush2.msra.mxu0 0.0
    %209 = vmatprep.subr.mxu0 0.0
    %210 = vmatpush2.msra.mxu0 0.0
    %211 = vmatprep.subr.mxu0 0.0
    %212 = vmatpush2.msra.mxu0 0.0
    %213 = vmatprep.subr.mxu0 0.0
    %214 = vmatpush2.msra.mxu0 0.0
    %215 = vmatprep.subr.mxu0 0.0
    %216 = vmatpush2.msra.mxu0 0.0
    %217 = vmatprep.subr.mxu0 0.0
    %218 = vmatpush2.msra.mxu0 0.0
    %219 = vmatprep.subr.mxu0 0.0
    %220 = vmatpush2.msra.mxu0 0.0
    %221 = vmatprep.subr.mxu0 0.0
    %222 = vmatpush2.msra.mxu0 0.0
    %223 = vmatprep.subr.mxu0 0.0
    %224 = vmatpush2.msra.mxu0 0.0
    %225 = vmatprep.subr.mxu0 0.0
    %226 = vmatpush2.msra.mxu0 0.0
    %227 = vmatprep.subr.mxu0 0.0
    %228 = vmatpush2.msra.mxu0 0.0
    %229 = vmatprep.mubr.f32.mxu0 0.0
    %230 = vmatmul.mubr.f32.gmra.mxu0 %v160
    %v231 = vpop.f32.mrf.mxu0
    %v232 = vadd.f32 0.0, %v231
    %v233 = vpop.f32.mrf.mxu0
    %234 = vmatprep.mubr.f32.mxu0 0.0
    %235 = vmatmul.mubr.f32.gmra.mxu0 %v163
    %v236 = vpop.f32.mrf.mxu0
    %v237 = vadd.f32 0.0, %v236
    %v238 = vpop.f32.mrf.mxu0
    %239 = vdwg.mxu0
    %v241 = vsel %vm158, %v142, 0
    %v244 = vsel %vm158, %v147, 0
    %246 = vmatprep.subr.mxu0 0.0
    %247 = vmatpush1.msra.mxu0 0.0
    %248 = vmatprep.subr.mxu0 0.0
    %249 = vmatpush1.msra.mxu0 0.0
    %250 = vmatprep.subr.mxu0 0.0
    %251 = vmatpush1.msra.mxu0 0.0
    %252 = vmatprep.subr.mxu0 0.0
    %253 = vmatpush1.msra.mxu0 0.0
    %254 = vmatprep.subr.mxu0 0.0
    %255 = vmatpush1.msra.mxu0 0.0
    %256 = vmatprep.subr.mxu0 0.0
    %257 = vmatpush1.msra.mxu0 0.0
    %258 = vmatprep.subr.mxu0 0.0
    %259 = vmatpush1.msra.mxu0 0.0
    %260 = vmatprep.subr.mxu0 0.0
    %261 = vmatpush1.msra.mxu0 0.0
    %262 = vmatprep.subr.mxu0 0.0
    %263 = vmatpush1.msra.mxu0 0.0
    %264 = vmatprep.subr.mxu0 0.0
    %265 = vmatpush1.msra.mxu0 0.0
    %266 = vmatprep.subr.mxu0 0.0
    %267 = vmatpush1.msra.mxu0 0.0
    %268 = vmatprep.subr.mxu0 0.0
    %269 = vmatpush1.msra.mxu0 0.0
    %270 = vmatprep.subr.mxu0 0.0
    %271 = vmatpush1.msra.mxu0 %v153
    %272 = vmatprep.subr.mxu0 0.0
    %273 = vmatpush1.msra.mxu0 %v152
    %274 = vmatprep.subr.mxu0 0.0
    %275 = vmatpush1.msra.mxu0 %v151
    %276 = vmatprep.subr.mxu0 0.0
    %277 = vmatpush1.msra.mxu0 %v150
    %278 = vmatprep.subr.mxu0 0.0
    %279 = vmatpush2.msra.mxu0 0.0
    %280 = vmatprep.subr.mxu0 0.0
    %281 = vmatpush2.msra.mxu0 0.0
    %282 = vmatprep.subr.mxu0 0.0
    %283 = vmatpush2.msra.mxu0 0.0
    %284 = vmatprep.subr.mxu0 0.0
    %285 = vmatpush2.msra.mxu0 0.0
    %286 = vmatprep.subr.mxu0 0.0
    %287 = vmatpush2.msra.mxu0 0.0
    %288 = vmatprep.subr.mxu0 0.0
    %289 = vmatpush2.msra.mxu0 0.0
    %290 = vmatprep.subr.mxu0 0.0
    %291 = vmatpush2.msra.mxu0 0.0
    %292 = vmatprep.subr.mxu0 0.0
    %293 = vmatpush2.msra.mxu0 0.0
    %294 = vmatprep.subr.mxu0 0.0
    %295 = vmatpush2.msra.mxu0 0.0
    %296 = vmatprep.subr.mxu0 0.0
    %297 = vmatpush2.msra.mxu0 0.0
    %298 = vmatprep.subr.mxu0 0.0
    %299 = vmatpush2.msra.mxu0 0.0
    %300 = vmatprep.subr.mxu0 0.0
    %301 = vmatpush2.msra.mxu0 0.0
    %302 = vmatprep.subr.mxu0 0.0
    %303 = vmatpush2.msra.mxu0 0.0
    %304 = vmatprep.subr.mxu0 0.0
    %305 = vmatpush2.msra.mxu0 0.0
    %306 = vmatprep.subr.mxu0 0.0
    %307 = vmatpush2.msra.mxu0 0.0
    %308 = vmatprep.subr.mxu0 0.0
    %309 = vmatpush2.msra.mxu0 0.0
    %310 = vmatprep.mubr.f32.mxu0 0.0
    %311 = vmatmul.mubr.f32.gmra.mxu0 %v241
    %v312 = vpop.f32.mrf.mxu0
    %v313 = vadd.f32 %v232, %v312
    %v314 = vpop.f32.mrf.mxu0
    %315 = vmatprep.mubr.f32.mxu0 0.0
    %316 = vmatmul.mubr.f32.gmra.mxu0 %v244
    %v317 = vpop.f32.mrf.mxu0
    %v318 = vadd.f32 %v237, %v317
    %v319 = vpop.f32.mrf.mxu0
    %320 = vdwg.mxu0
    %v321 = vlaneseq
    %v322 = vshrl.u32 %v321, 7
    %v323 = vsub.s32 0, %v322
    %v324 = vrot.slane %v67, %v323
    %v325 = vadd.f32 %v313, %v324
    %v326 = vadd.f32 %v318, %v324
    %v327 = vsel %vm158, %v325, -inf
    %v328 = vrot.slane %v327, 4
    %v329 = vmax.f32 %v327, %v328
    %v330 = vrot.slane %v329, 2
    %v331 = vmax.f32 %v329, %v330
    %v332 = vrot.slane %v331, 1
    %v333 = vmax.f32 %v331, %v332
    %v334 = vsel %vm158, %v326, -inf
    %v335 = vrot.slane %v334, 4
    %v336 = vmax.f32 %v334, %v335
    %v337 = vrot.slane %v336, 2
    %v338 = vmax.f32 %v336, %v337
    %v339 = vrot.slane %v338, 1
    %v340 = vmax.f32 %v338, %v339
    %341 = vmatprep.subr.mxu0 0.0
    %342 = vmatpush1.msra.mxu0 0.0
    %343 = vmatprep.subr.mxu0 0.0
    %344 = vmatpush1.msra.mxu0 0.0
    %345 = vmatprep.subr.mxu0 0.0
    %346 = vmatpush1.msra.mxu0 0.0
    %347 = vmatprep.subr.mxu0 0.0
    %348 = vmatpush1.msra.mxu0 0.0
    %349 = vmatprep.subr.mxu0 0.0
    %350 = vmatpush1.msra.mxu0 0.0
    %351 = vmatprep.subr.mxu0 0.0
    %352 = vmatpush1.msra.mxu0 0.0
    %353 = vmatprep.subr.mxu0 0.0
    %354 = vmatpush1.msra.mxu0 0.0
    %355 = vmatprep.subr.mxu0 0.0
    %356 = vmatpush1.msra.mxu0 0.0
    %357 = vmatprep.subr.mxu0 0.0
    %358 = vmatpush1.msra.mxu0 0.0
    %359 = vmatprep.subr.mxu0 0.0
    %360 = vmatpush1.msra.mxu0 0.0
    %361 = vmatprep.subr.mxu0 0.0
    %362 = vmatpush1.msra.mxu0 0.0
    %363 = vmatprep.subr.mxu0 0.0
    %364 = vmatpush1.msra.mxu0 0.0
    %365 = vmatprep.subr.mxu0 0.0
    %366 = vmatpush1.msra.mxu0 0.0
    %367 = vmatprep.subr.mxu0 0.0
    %368 = vmatpush1.msra.mxu0 0.0
    %369 = vmatprep.subr.mxu0 0.0
    %370 = vmatpush1.msra.mxu0 %v326
    %371 = vmatprep.subr.mxu0 0.0
    %372 = vmatpush1.msra.mxu0 %v325
    %373 = vmatprep.subr.mxu0 0.0
    %374 = vmatpush2.msra.mxu0 0.0
    %375 = vmatprep.subr.mxu0 0.0
    %376 = vmatpush2.msra.mxu0 0.0
    %377 = vmatprep.subr.mxu0 0.0
    %378 = vmatpush2.msra.mxu0 0.0
    %379 = vmatprep.subr.mxu0 0.0
    %380 = vmatpush2.msra.mxu0 0.0
    %381 = vmatprep.subr.mxu0 0.0
    %382 = vmatpush2.msra.mxu0 0.0
    %383 = vmatprep.subr.mxu0 0.0
    %384 = vmatpush2.msra.mxu0 0.0
    %385 = vmatprep.subr.mxu0 0.0
    %386 = vmatpush2.msra.mxu0 0.0
    %387 = vmatprep.subr.mxu0 0.0
    %388 = vmatpush2.msra.mxu0 0.0
    %389 = vmatprep.subr.mxu0 0.0
    %390 = vmatpush2.msra.mxu0 0.0
    %391 = vmatprep.subr.mxu0 0.0
    %392 = vmatpush2.msra.mxu0 0.0
    %393 = vmatprep.subr.mxu0 0.0
    %394 = vmatpush2.msra.mxu0 0.0
    %395 = vmatprep.subr.mxu0 0.0
    %396 = vmatpush2.msra.mxu0 0.0
    %397 = vmatprep.subr.mxu0 0.0
    %398 = vmatpush2.msra.mxu0 0.0
    %399 = vmatprep.subr.mxu0 0.0
    %400 = vmatpush2.msra.mxu0 0.0
    %401 = vmatprep.subr.mxu0 0.0
    %402 = vmatpush2.msra.mxu0 0.0
    %403 = vmatprep.subr.mxu0 0.0
    %404 = vmatpush2.msra.mxu0 0.0
    %405 = vmatprep.mubr.f32.mxu0 0.0
    %406 = vmatmul.mubr.f32.gmra.mxu0 %v70
    %v407 = vpop.f32.mrf.mxu0
    %v408 = vadd.f32 0.0, %v407
    %v409 = vpop.f32.mrf.mxu0
    %410 = vmatprep.mubr.f32.mxu0 0.0
    %411 = vmatmul.mubr.f32.gmra.mxu0 %v73
    %v412 = vpop.f32.mrf.mxu0
    %v413 = vadd.f32 0.0, %v412
    %v414 = vpop.f32.mrf.mxu0
    %415 = vdwg.mxu0
    %v416 = vld [vmem:[#allocation7 + $0x48] sm:$0xff]
    %v417 = vld [vmem:[#allocation7 + $0x50] sm:$0xff]
    %v418 = vld [vmem:[#allocation7 + $0x58] sm:$0xff]
    %v419 = vld [vmem:[#allocation7 + $0x60] sm:$0xff]
    %v420 = vld [vmem:[#allocation7 + $0x68] sm:$0xff]
    %v421 = vld [vmem:[#allocation7 + $0x70] sm:$0xff]
    %v422 = vld [vmem:[#allocation7 + $0x78] sm:$0xff]
    %v423 = vld [vmem:[#allocation7 + $0x80] sm:$0xff]
    %v425 = vsel %vm158, %v325, 0
    %v428 = vsel %vm158, %v326, 0
    %430 = vmatprep.subr.mxu0 0.0
    %431 = vmatpush1.msra.mxu0 0.0
    %432 = vmatprep.subr.mxu0 0.0
    %433 = vmatpush1.msra.mxu0 0.0
    %434 = vmatprep.subr.mxu0 0.0
    %435 = vmatpush1.msra.mxu0 0.0
    %436 = vmatprep.subr.mxu0 0.0
    %437 = vmatpush1.msra.mxu0 0.0
    %438 = vmatprep.subr.mxu0 0.0
    %439 = vmatpush1.msra.mxu0 0.0
    %440 = vmatprep.subr.mxu0 0.0
    %441 = vmatpush1.msra.mxu0 0.0
    %442 = vmatprep.subr.mxu0 0.0
    %443 = vmatpush1.msra.mxu0 0.0
    %444 = vmatprep.subr.mxu0 0.0
    %445 = vmatpush1.msra.mxu0 0.0
    %446 = vmatprep.subr.mxu0 0.0
    %447 = vmatpush1.msra.mxu0 0.0
    %448 = vmatprep.subr.mxu0 0.0
    %449 = vmatpush1.msra.mxu0 0.0
    %450 = vmatprep.subr.mxu0 0.0
    %451 = vmatpush1.msra.mxu0 0.0
    %452 = vmatprep.subr.mxu0 0.0
    %453 = vmatpush1.msra.mxu0 0.0
    %454 = vmatprep.subr.mxu0 0.0
    %455 = vmatpush1.msra.mxu0 %v423
    %456 = vmatprep.subr.mxu0 0.0
    %457 = vmatpush1.msra.mxu0 %v422
    %458 = vmatprep.subr.mxu0 0.0
    %459 = vmatpush1.msra.mxu0 %v421
    %460 = vmatprep.subr.mxu0 0.0
    %461 = vmatpush1.msra.mxu0 %v420
    %462 = vmatprep.subr.mxu0 0.0
    %463 = vmatpush2.msra.mxu0 0.0
    %464 = vmatprep.subr.mxu0 0.0
    %465 = vmatpush2.msra.mxu0 0.0
    %466 = vmatprep.subr.mxu0 0.0
    %467 = vmatpush2.msra.mxu0 0.0
    %468 = vmatprep.subr.mxu0 0.0
    %469 = vmatpush2.msra.mxu0 0.0
    %470 = vmatprep.subr.mxu0 0.0
    %471 = vmatpush2.msra.mxu0 0.0
    %472 = vmatprep.subr.mxu0 0.0
    %473 = vmatpush2.msra.mxu0 0.0
    %474 = vmatprep.subr.mxu0 0.0
    %475 = vmatpush2.msra.mxu0 0.0
    %476 = vmatprep.subr.mxu0 0.0
    %477 = vmatpush2.msra.mxu0 0.0
    %478 = vmatprep.subr.mxu0 0.0
    %479 = vmatpush2.msra.mxu0 0.0
    %480 = vmatprep.subr.mxu0 0.0
    %481 = vmatpush2.msra.mxu0 0.0
    %482 = vmatprep.subr.mxu0 0.0
    %483 = vmatpush2.msra.mxu0 0.0
    %484 = vmatprep.subr.mxu0 0.0
    %485 = vmatpush2.msra.mxu0 0.0
    %486 = vmatprep.subr.mxu0 0.0
    %487 = vmatpush2.msra.mxu0 0.0
    %488 = vmatprep.subr.mxu0 0.0
    %489 = vmatpush2.msra.mxu0 0.0
    %490 = vmatprep.subr.mxu0 0.0
    %491 = vmatpush2.msra.mxu0 0.0
    %492 = vmatprep.subr.mxu0 0.0
    %493 = vmatpush2.msra.mxu0 0.0
    %494 = vmatprep.mubr.f32.mxu0 0.0
    %495 = vmatmul.mubr.f32.gmra.mxu0 %v425
    %v496 = vpop.f32.mrf.mxu0
    %v497 = vadd.f32 0.0, %v496
    %v498 = vpop.f32.mrf.mxu0
    %499 = vmatprep.mubr.f32.mxu0 0.0
    %500 = vmatmul.mubr.f32.gmra.mxu0 %v428
    %v501 = vpop.f32.mrf.mxu0
    %v502 = vadd.f32 0.0, %v501
    %v503 = vpop.f32.mrf.mxu0
    %504 = vdwg.mxu0
    %v506 = vsel %vm158, %v408, 0
    %v509 = vsel %vm158, %v413, 0
    %511 = vmatprep.subr.mxu0 0.0
    %512 = vmatpush1.msra.mxu0 0.0
    %513 = vmatprep.subr.mxu0 0.0
    %514 = vmatpush1.msra.mxu0 0.0
    %515 = vmatprep.subr.mxu0 0.0
    %516 = vmatpush1.msra.mxu0 0.0
    %517 = vmatprep.subr.mxu0 0.0
    %518 = vmatpush1.msra.mxu0 0.0
    %519 = vmatprep.subr.mxu0 0.0
    %520 = vmatpush1.msra.mxu0 0.0
    %521 = vmatprep.subr.mxu0 0.0
    %522 = vmatpush1.msra.mxu0 0.0
    %523 = vmatprep.subr.mxu0 0.0
    %524 = vmatpush1.msra.mxu0 0.0
    %525 = vmatprep.subr.mxu0 0.0
    %526 = vmatpush1.msra.mxu0 0.0
    %527 = vmatprep.subr.mxu0 0.0
    %528 = vmatpush1.msra.mxu0 0.0
    %529 = vmatprep.subr.mxu0 0.0
    %530 = vmatpush1.msra.mxu0 0.0
    %531 = vmatprep.subr.mxu0 0.0
    %532 = vmatpush1.msra.mxu0 0.0
    %533 = vmatprep.subr.mxu0 0.0
    %534 = vmatpush1.msra.mxu0 0.0
    %535 = vmatprep.subr.mxu0 0.0
    %536 = vmatpush1.msra.mxu0 %v419
    %537 = vmatprep.subr.mxu0 0.0
    %538 = vmatpush1.msra.mxu0 %v418
    %539 = vmatprep.subr.mxu0 0.0
    %540 = vmatpush1.msra.mxu0 %v417
    %541 = vmatprep.subr.mxu0 0.0
    %542 = vmatpush1.msra.mxu0 %v416
    %543 = vmatprep.subr.mxu0 0.0
    %544 = vmatpush2.msra.mxu0 0.0
    %545 = vmatprep.subr.mxu0 0.0
    %546 = vmatpush2.msra.mxu0 0.0
    %547 = vmatprep.subr.mxu0 0.0
    %548 = vmatpush2.msra.mxu0 0.0
    %549 = vmatprep.subr.mxu0 0.0
    %550 = vmatpush2.msra.mxu0 0.0
    %551 = vmatprep.subr.mxu0 0.0
    %552 = vmatpush2.msra.mxu0 0.0
    %553 = vmatprep.subr.mxu0 0.0
    %554 = vmatpush2.msra.mxu0 0.0
    %555 = vmatprep.subr.mxu0 0.0
    %556 = vmatpush2.msra.mxu0 0.0
    %557 = vmatprep.subr.mxu0 0.0
    %558 = vmatpush2.msra.mxu0 0.0
    %559 = vmatprep.subr.mxu0 0.0
    %560 = vmatpush2.msra.mxu0 0.0
    %561 = vmatprep.subr.mxu0 0.0
    %562 = vmatpush2.msra.mxu0 0.0
    %563 = vmatprep.subr.mxu0 0.0
    %564 = vmatpush2.msra.mxu0 0.0
    %565 = vmatprep.subr.mxu0 0.0
    %566 = vmatpush2.msra.mxu0 0.0
    %567 = vmatprep.subr.mxu0 0.0
    %568 = vmatpush2.msra.mxu0 0.0
    %569 = vmatprep.subr.mxu0 0.0
    %570 = vmatpush2.msra.mxu0 0.0
    %571 = vmatprep.subr.mxu0 0.0
    %572 = vmatpush2.msra.mxu0 0.0
    %573 = vmatprep.subr.mxu0 0.0
    %574 = vmatpush2.msra.mxu0 0.0
    %575 = vmatprep.mubr.f32.mxu0 0.0
    %576 = vmatmul.mubr.f32.gmra.mxu0 %v506
    %v577 = vpop.f32.mrf.mxu0
    %v578 = vadd.f32 %v497, %v577
    %v579 = vpop.f32.mrf.mxu0
    %580 = vmatprep.mubr.f32.mxu0 0.0
    %581 = vmatmul.mubr.f32.gmra.mxu0 %v509
    %v582 = vpop.f32.mrf.mxu0
    %v583 = vadd.f32 %v502, %v582
    %v584 = vpop.f32.mrf.mxu0
    %585 = vdwg.mxu0
    %v586 = vlaneseq
    %v587 = vshrl.u32 %v586, 7
    %v588 = vsub.s32 1, %v587
    %v589 = vrot.slane %v67, %v588
    %v590 = vadd.f32 %v578, %v589
    %v591 = vadd.f32 %v583, %v589
    %v592 = vsel %vm158, %v590, -inf
    %v593 = vrot.slane %v592, 4
    %v594 = vmax.f32 %v592, %v593
    %v595 = vrot.slane %v594, 2
    %v596 = vmax.f32 %v594, %v595
    %v597 = vrot.slane %v596, 1
    %v598 = vmax.f32 %v596, %v597
    %v599 = vsel %vm158, %v591, -inf
    %v600 = vrot.slane %v599, 4
    %v601 = vmax.f32 %v599, %v600
    %v602 = vrot.slane %v601, 2
    %v603 = vmax.f32 %v601, %v602
    %v604 = vrot.slane %v603, 1
    %v605 = vmax.f32 %v603, %v604
    %606 = vmatprep.subr.mxu0 0.0
    %607 = vmatpush1.msra.mxu0 0.0
    %608 = vmatprep.subr.mxu0 0.0
    %609 = vmatpush1.msra.mxu0 0.0
    %610 = vmatprep.subr.mxu0 0.0
    %611 = vmatpush1.msra.mxu0 0.0
    %612 = vmatprep.subr.mxu0 0.0
    %613 = vmatpush1.msra.mxu0 0.0
    %614 = vmatprep.subr.mxu0 0.0
    %615 = vmatpush1.msra.mxu0 0.0
    %616 = vmatprep.subr.mxu0 0.0
    %617 = vmatpush1.msra.mxu0 0.0
    %618 = vmatprep.subr.mxu0 0.0
    %619 = vmatpush1.msra.mxu0 0.0
    %620 = vmatprep.subr.mxu0 0.0
    %621 = vmatpush1.msra.mxu0 0.0
    %622 = vmatprep.subr.mxu0 0.0
    %623 = vmatpush1.msra.mxu0 0.0
    %624 = vmatprep.subr.mxu0 0.0
    %625 = vmatpush1.msra.mxu0 0.0
    %626 = vmatprep.subr.mxu0 0.0
    %627 = vmatpush1.msra.mxu0 0.0
    %628 = vmatprep.subr.mxu0 0.0
    %629 = vmatpush1.msra.mxu0 0.0
    %630 = vmatprep.subr.mxu0 0.0
    %631 = vmatpush1.msra.mxu0 0.0
    %632 = vmatprep.subr.mxu0 0.0
    %633 = vmatpush1.msra.mxu0 0.0
    %634 = vmatprep.subr.mxu0 0.0
    %635 = vmatpush1.msra.mxu0 %v591
    %636 = vmatprep.subr.mxu0 0.0
    %637 = vmatpush1.msra.mxu0 %v590
    %638 = vmatprep.subr.mxu0 0.0
    %639 = vmatpush2.msra.mxu0 0.0
    %640 = vmatprep.subr.mxu0 0.0
    %641 = vmatpush2.msra.mxu0 0.0
    %642 = vmatprep.subr.mxu0 0.0
    %643 = vmatpush2.msra.mxu0 0.0
    %644 = vmatprep.subr.mxu0 0.0
    %645 = vmatpush2.msra.mxu0 0.0
    %646 = vmatprep.subr.mxu0 0.0
    %647 = vmatpush2.msra.mxu0 0.0
    %648 = vmatprep.subr.mxu0 0.0
    %649 = vmatpush2.msra.mxu0 0.0
    %650 = vmatprep.subr.mxu0 0.0
    %651 = vmatpush2.msra.mxu0 0.0
    %652 = vmatprep.subr.mxu0 0.0
    %653 = vmatpush2.msra.mxu0 0.0
    %654 = vmatprep.subr.mxu0 0.0
    %655 = vmatpush2.msra.mxu0 0.0
    %656 = vmatprep.subr.mxu0 0.0
    %657 = vmatpush2.msra.mxu0 0.0
    %658 = vmatprep.subr.mxu0 0.0
    %659 = vmatpush2.msra.mxu0 0.0
    %660 = vmatprep.subr.mxu0 0.0
    %661 = vmatpush2.msra.mxu0 0.0
    %662 = vmatprep.subr.mxu0 0.0
    %663 = vmatpush2.msra.mxu0 0.0
    %664 = vmatprep.subr.mxu0 0.0
    %665 = vmatpush2.msra.mxu0 0.0
    %666 = vmatprep.subr.mxu0 0.0
    %667 = vmatpush2.msra.mxu0 0.0
    %668 = vmatprep.subr.mxu0 0.0
    %669 = vmatpush2.msra.mxu0 0.0
    %670 = vmatprep.mubr.f32.mxu0 0.0
    %671 = vmatmul.mubr.f32.gmra.mxu0 %v70
    %v672 = vpop.f32.mrf.mxu0
    %v673 = vadd.f32 0.0, %v672
    %v674 = vpop.f32.mrf.mxu0
    %675 = vmatprep.mubr.f32.mxu0 0.0
    %676 = vmatmul.mubr.f32.gmra.mxu0 %v73
    %v677 = vpop.f32.mrf.mxu0
    %v678 = vadd.f32 0.0, %v677
    %v679 = vpop.f32.mrf.mxu0
    %680 = vdwg.mxu0
    %v681 = vld [vmem:[#allocation7 + $0x88] sm:$0xff]
    %v682 = vld [vmem:[#allocation7 + $0x90] sm:$0xff]
    %v683 = vld [vmem:[#allocation7 + $0x98] sm:$0xff]
    %v684 = vld [vmem:[#allocation7 + $0xa0] sm:$0xff]
    %v685 = vld [vmem:[#allocation7 + $0xa8] sm:$0xff]
    %v686 = vld [vmem:[#allocation7 + $0xb0] sm:$0xff]
    %v687 = vld [vmem:[#allocation7 + $0xb8] sm:$0xff]
    %v688 = vld [vmem:[#allocation7 + $0xc0] sm:$0xff]
    %v690 = vsel %vm158, %v590, 0
    %v693 = vsel %vm158, %v591, 0
    %695 = vmatprep.subr.mxu0 0.0
    %696 = vmatpush1.msra.mxu0 0.0
    %697 = vmatprep.subr.mxu0 0.0
    %698 = vmatpush1.msra.mxu0 0.0
    %699 = vmatprep.subr.mxu0 0.0
    %700 = vmatpush1.msra.mxu0 0.0
    %701 = vmatprep.subr.mxu0 0.0
    %702 = vmatpush1.msra.mxu0 0.0
    %703 = vmatprep.subr.mxu0 0.0
    %704 = vmatpush1.msra.mxu0 0.0
    %705 = vmatprep.subr.mxu0 0.0
    %706 = vmatpush1.msra.mxu0 0.0
    %707 = vmatprep.subr.mxu0 0.0
    %708 = vmatpush1.msra.mxu0 0.0
    %709 = vmatprep.subr.mxu0 0.0
    %710 = vmatpush1.msra.mxu0 0.0
    %711 = vmatprep.subr.mxu0 0.0
    %712 = vmatpush1.msra.mxu0 0.0
    %713 = vmatprep.subr.mxu0 0.0
    %714 = vmatpush1.msra.mxu0 0.0
    %715 = vmatprep.subr.mxu0 0.0
    %716 = vmatpush1.msra.mxu0 0.0
    %717 = vmatprep.subr.mxu0 0.0
    %718 = vmatpush1.msra.mxu0 0.0
    %719 = vmatprep.subr.mxu0 0.0
    %720 = vmatpush1.msra.mxu0 %v688
    %721 = vmatprep.subr.mxu0 0.0
    %722 = vmatpush1.msra.mxu0 %v687
    %723 = vmatprep.subr.mxu0 0.0
    %724 = vmatpush1.msra.mxu0 %v686
    %725 = vmatprep.subr.mxu0 0.0
    %726 = vmatpush1.msra.mxu0 %v685
    %727 = vmatprep.subr.mxu0 0.0
    %728 = vmatpush2.msra.mxu0 0.0
    %729 = vmatprep.subr.mxu0 0.0
    %730 = vmatpush2.msra.mxu0 0.0
    %731 = vmatprep.subr.mxu0 0.0
    %732 = vmatpush2.msra.mxu0 0.0
    %733 = vmatprep.subr.mxu0 0.0
    %734 = vmatpush2.msra.mxu0 0.0
    %735 = vmatprep.subr.mxu0 0.0
    %736 = vmatpush2.msra.mxu0 0.0
    %737 = vmatprep.subr.mxu0 0.0
    %738 = vmatpush2.msra.mxu0 0.0
    %739 = vmatprep.subr.mxu0 0.0
    %740 = vmatpush2.msra.mxu0 0.0
    %741 = vmatprep.subr.mxu0 0.0
    %742 = vmatpush2.msra.mxu0 0.0
    %743 = vmatprep.subr.mxu0 0.0
    %744 = vmatpush2.msra.mxu0 0.0
    %745 = vmatprep.subr.mxu0 0.0
    %746 = vmatpush2.msra.mxu0 0.0
    %747 = vmatprep.subr.mxu0 0.0
    %748 = vmatpush2.msra.mxu0 0.0
    %749 = vmatprep.subr.mxu0 0.0
    %750 = vmatpush2.msra.mxu0 0.0
    %751 = vmatprep.subr.mxu0 0.0
    %752 = vmatpush2.msra.mxu0 0.0
    %753 = vmatprep.subr.mxu0 0.0
    %754 = vmatpush2.msra.mxu0 0.0
    %755 = vmatprep.subr.mxu0 0.0
    %756 = vmatpush2.msra.mxu0 0.0
    %757 = vmatprep.subr.mxu0 0.0
    %758 = vmatpush2.msra.mxu0 0.0
    %759 = vmatprep.mubr.f32.mxu0 0.0
    %760 = vmatmul.mubr.f32.gmra.mxu0 %v690
    %v761 = vpop.f32.mrf.mxu0
    %v762 = vadd.f32 0.0, %v761
    %v763 = vpop.f32.mrf.mxu0
    %764 = vmatprep.mubr.f32.mxu0 0.0
    %765 = vmatmul.mubr.f32.gmra.mxu0 %v693
    %v766 = vpop.f32.mrf.mxu0
    %v767 = vadd.f32 0.0, %v766
    %v768 = vpop.f32.mrf.mxu0
    %769 = vdwg.mxu0
    %v771 = vsel %vm158, %v673, 0
    %v774 = vsel %vm158, %v678, 0
    %776 = vmatprep.subr.mxu0 0.0
    %777 = vmatpush1.msra.mxu0 0.0
    %778 = vmatprep.subr.mxu0 0.0
    %779 = vmatpush1.msra.mxu0 0.0
    %780 = vmatprep.subr.mxu0 0.0
    %781 = vmatpush1.msra.mxu0 0.0
    %782 = vmatprep.subr.mxu0 0.0
    %783 = vmatpush1.msra.mxu0 0.0
    %784 = vmatprep.subr.mxu0 0.0
    %785 = vmatpush1.msra.mxu0 0.0
    %786 = vmatprep.subr.mxu0 0.0
    %787 = vmatpush1.msra.mxu0 0.0
    %788 = vmatprep.subr.mxu0 0.0
    %789 = vmatpush1.msra.mxu0 0.0
    %790 = vmatprep.subr.mxu0 0.0
    %791 = vmatpush1.msra.mxu0 0.0
    %792 = vmatprep.subr.mxu0 0.0
    %793 = vmatpush1.msra.mxu0 0.0
    %794 = vmatprep.subr.mxu0 0.0
    %795 = vmatpush1.msra.mxu0 0.0
    %796 = vmatprep.subr.mxu0 0.0
    %797 = vmatpush1.msra.mxu0 0.0
    %798 = vmatprep.subr.mxu0 0.0
    %799 = vmatpush1.msra.mxu0 0.0
    %800 = vmatprep.subr.mxu0 0.0
    %801 = vmatpush1.msra.mxu0 %v684
    %802 = vmatprep.subr.mxu0 0.0
    %803 = vmatpush1.msra.mxu0 %v683
    %804 = vmatprep.subr.mxu0 0.0
    %805 = vmatpush1.msra.mxu0 %v682
    %806 = vmatprep.subr.mxu0 0.0
    %807 = vmatpush1.msra.mxu0 %v681
    %808 = vmatprep.subr.mxu0 0.0
    %809 = vmatpush2.msra.mxu0 0.0
    %810 = vmatprep.subr.mxu0 0.0
    %811 = vmatpush2.msra.mxu0 0.0
    %812 = vmatprep.subr.mxu0 0.0
    %813 = vmatpush2.msra.mxu0 0.0
    %814 = vmatprep.subr.mxu0 0.0
    %815 = vmatpush2.msra.mxu0 0.0
    %816 = vmatprep.subr.mxu0 0.0
    %817 = vmatpush2.msra.mxu0 0.0
    %818 = vmatprep.subr.mxu0 0.0
    %819 = vmatpush2.msra.mxu0 0.0
    %820 = vmatprep.subr.mxu0 0.0
    %821 = vmatpush2.msra.mxu0 0.0
    %822 = vmatprep.subr.mxu0 0.0
    %823 = vmatpush2.msra.mxu0 0.0
    %824 = vmatprep.subr.mxu0 0.0
    %825 = vmatpush2.msra.mxu0 0.0
    %826 = vmatprep.subr.mxu0 0.0
    %827 = vmatpush2.msra.mxu0 0.0
    %828 = vmatprep.subr.mxu0 0.0
    %829 = vmatpush2.msra.mxu0 0.0
    %830 = vmatprep.subr.mxu0 0.0
    %831 = vmatpush2.msra.mxu0 0.0
    %832 = vmatprep.subr.mxu0 0.0
    %833 = vmatpush2.msra.mxu0 0.0
    %834 = vmatprep.subr.mxu0 0.0
    %835 = vmatpush2.msra.mxu0 0.0
    %836 = vmatprep.subr.mxu0 0.0
    %837 = vmatpush2.msra.mxu0 0.0
    %838 = vmatprep.subr.mxu0 0.0
    %839 = vmatpush2.msra.mxu0 0.0
    %840 = vmatprep.mubr.f32.mxu0 0.0
    %841 = vmatmul.mubr.f32.gmra.mxu0 %v771
    %v842 = vpop.f32.mrf.mxu0
    %v843 = vadd.f32 %v762, %v842
    %v844 = vpop.f32.mrf.mxu0
    %845 = vmatprep.mubr.f32.mxu0 0.0
    %846 = vmatmul.mubr.f32.gmra.mxu0 %v774
    %v847 = vpop.f32.mrf.mxu0
    %v848 = vadd.f32 %v767, %v847
    %v849 = vpop.f32.mrf.mxu0
    %850 = vdwg.mxu0
    %v851 = vlaneseq
    %v852 = vshrl.u32 %v851, 7
    %v853 = vsub.s32 2, %v852
    %v854 = vrot.slane %v67, %v853
    %v855 = vadd.f32 %v843, %v854
    %v856 = vadd.f32 %v848, %v854
    %v857 = vsel %vm158, %v855, -inf
    %v858 = vrot.slane %v857, 4
    %v859 = vmax.f32 %v857, %v858
    %v860 = vrot.slane %v859, 2
    %v861 = vmax.f32 %v859, %v860
    %v862 = vrot.slane %v861, 1
    %v863 = vmax.f32 %v861, %v862
    %v864 = vsel %vm158, %v856, -inf
    %v865 = vrot.slane %v864, 4
    %v866 = vmax.f32 %v864, %v865
    %v867 = vrot.slane %v866, 2
    %v868 = vmax.f32 %v866, %v867
    %v869 = vrot.slane %v868, 1
    %v870 = vmax.f32 %v868, %v869
    %v871 = vld [vmem:[#allocation7 + $0xc8] sm:$0xff]
    %v872 = vld [vmem:[#allocation7 + $0xd0] sm:$0xff]
    %v873 = vld [vmem:[#allocation7 + $0xd8] sm:$0xff]
    %v874 = vld [vmem:[#allocation7 + $0xe0] sm:$0xff]
    %v876 = vsel %vm158, %v855, 0
    %v879 = vsel %vm158, %v856, 0
    %881 = vmatprep.subr.mxu0 0.0
    %882 = vmatpush1.msra.mxu0 0.0
    %883 = vmatprep.subr.mxu0 0.0
    %884 = vmatpush1.msra.mxu0 0.0
    %885 = vmatprep.subr.mxu0 0.0
    %886 = vmatpush1.msra.mxu0 0.0
    %887 = vmatprep.subr.mxu0 0.0
    %888 = vmatpush1.msra.mxu0 0.0
    %889 = vmatprep.subr.mxu0 0.0
    %890 = vmatpush1.msra.mxu0 0.0
    %891 = vmatprep.subr.mxu0 0.0
    %892 = vmatpush1.msra.mxu0 0.0
    %893 = vmatprep.subr.mxu0 0.0
    %894 = vmatpush1.msra.mxu0 0.0
    %895 = vmatprep.subr.mxu0 0.0
    %896 = vmatpush1.msra.mxu0 0.0
    %897 = vmatprep.subr.mxu0 0.0
    %898 = vmatpush1.msra.mxu0 0.0
    %899 = vmatprep.subr.mxu0 0.0
    %900 = vmatpush1.msra.mxu0 0.0
    %901 = vmatprep.subr.mxu0 0.0
    %902 = vmatpush1.msra.mxu0 0.0
    %903 = vmatprep.subr.mxu0 0.0
    %904 = vmatpush1.msra.mxu0 0.0
    %905 = vmatprep.subr.mxu0 0.0
    %906 = vmatpush1.msra.mxu0 %v874
    %907 = vmatprep.subr.mxu0 0.0
    %908 = vmatpush1.msra.mxu0 %v873
    %909 = vmatprep.subr.mxu0 0.0
    %910 = vmatpush1.msra.mxu0 %v872
    %911 = vmatprep.subr.mxu0 0.0
    %912 = vmatpush1.msra.mxu0 %v871
    %913 = vmatprep.subr.mxu0 0.0
    %914 = vmatpush2.msra.mxu0 0.0
    %915 = vmatprep.subr.mxu0 0.0
    %916 = vmatpush2.msra.mxu0 0.0
    %917 = vmatprep.subr.mxu0 0.0
    %918 = vmatpush2.msra.mxu0 0.0
    %919 = vmatprep.subr.mxu0 0.0
    %920 = vmatpush2.msra.mxu0 0.0
    %921 = vmatprep.subr.mxu0 0.0
    %922 = vmatpush2.msra.mxu0 0.0
    %923 = vmatprep.subr.mxu0 0.0
    %924 = vmatpush2.msra.mxu0 0.0
    %925 = vmatprep.subr.mxu0 0.0
    %926 = vmatpush2.msra.mxu0 0.0
    %927 = vmatprep.subr.mxu0 0.0
    %928 = vmatpush2.msra.mxu0 0.0
    %929 = vmatprep.subr.mxu0 0.0
    %930 = vmatpush2.msra.mxu0 0.0
    %931 = vmatprep.subr.mxu0 0.0
    %932 = vmatpush2.msra.mxu0 0.0
    %933 = vmatprep.subr.mxu0 0.0
    %934 = vmatpush2.msra.mxu0 0.0
    %935 = vmatprep.subr.mxu0 0.0
    %936 = vmatpush2.msra.mxu0 0.0
    %937 = vmatprep.subr.mxu0 0.0
    %938 = vmatpush2.msra.mxu0 0.0
    %939 = vmatprep.subr.mxu0 0.0
    %940 = vmatpush2.msra.mxu0 0.0
    %941 = vmatprep.subr.mxu0 0.0
    %942 = vmatpush2.msra.mxu0 0.0
    %943 = vmatprep.subr.mxu0 0.0
    %944 = vmatpush2.msra.mxu0 0.0
    %945 = vmatprep.mubr.f32.mxu0 0.0
    %946 = vmatmul.mubr.f32.gmra.mxu0 %v876
    %v947 = vpop.f32.mrf.mxu0
    %v948 = vadd.f32 0.0, %v947
    %v949 = vpop.f32.mrf.mxu0
    %950 = vmatprep.mubr.f32.mxu0 0.0
    %951 = vmatmul.mubr.f32.gmra.mxu0 %v879
    %v952 = vpop.f32.mrf.mxu0
    %v953 = vadd.f32 0.0, %v952
    %v954 = vpop.f32.mrf.mxu0
    %955 = vdwg.mxu0
    %v956 = vlaneseq
    %v957 = vshrl.u32 %v956, 7
    %v958 = vsub.s32 3, %v957
    %v959 = vrot.slane %v67, %v958
    %v961 = vsel %vm68, %v62, 0
    %v964 = vsel %vm68, %v63, 0
    %966 = vmatprep.subr.mxu0 0.0
    %967 = vmatpush1.msra.mxu0 0.0
    %968 = vmatprep.subr.mxu0 0.0
    %969 = vmatpush1.msra.mxu0 0.0
    %970 = vmatprep.subr.mxu0 0.0
    %971 = vmatpush1.msra.mxu0 0.0
    %972 = vmatprep.subr.mxu0 0.0
    %973 = vmatpush1.msra.mxu0 0.0
    %974 = vmatprep.subr.mxu0 0.0
    %975 = vmatpush1.msra.mxu0 0.0
    %976 = vmatprep.subr.mxu0 0.0
    %977 = vmatpush1.msra.mxu0 0.0
    %978 = vmatprep.subr.mxu0 0.0
    %979 = vmatpush1.msra.mxu0 0.0
    %980 = vmatprep.subr.mxu0 0.0
    %981 = vmatpush1.msra.mxu0 0.0
    %982 = vmatprep.subr.mxu0 0.0
    %983 = vmatpush1.msra.mxu0 0.0
    %984 = vmatprep.subr.mxu0 0.0
    %985 = vmatpush1.msra.mxu0 0.0
    %986 = vmatprep.subr.mxu0 0.0
    %987 = vmatpush1.msra.mxu0 0.0
    %988 = vmatprep.subr.mxu0 0.0
    %989 = vmatpush1.msra.mxu0 0.0
    %990 = vmatprep.subr.mxu0 0.0
    %991 = vmatpush1.msra.mxu0 0.0
    %992 = vmatprep.subr.mxu0 0.0
    %993 = vmatpush1.msra.mxu0 0.0
    %994 = vmatprep.subr.mxu0 0.0
    %995 = vmatpush1.msra.mxu0 %v953
    %996 = vmatprep.subr.mxu0 0.0
    %997 = vmatpush1.msra.mxu0 %v948
    %998 = vmatprep.subr.mxu0 0.0
    %999 = vmatpush2.msra.mxu0 0.0
    %1000 = vmatprep.subr.mxu0 0.0
    %1001 = vmatpush2.msra.mxu0 0.0
    %1002 = vmatprep.subr.mxu0 0.0
    %1003 = vmatpush2.msra.mxu0 0.0
    %1004 = vmatprep.subr.mxu0 0.0
    %1005 = vmatpush2.msra.mxu0 0.0
    %1006 = vmatprep.subr.mxu0 0.0
    %1007 = vmatpush2.msra.mxu0 0.0
    %1008 = vmatprep.subr.mxu0 0.0
    %1009 = vmatpush2.msra.mxu0 0.0
    %1010 = vmatprep.subr.mxu0 0.0
    %1011 = vmatpush2.msra.mxu0 0.0
    %1012 = vmatprep.subr.mxu0 0.0
    %1013 = vmatpush2.msra.mxu0 0.0
    %1014 = vmatprep.subr.mxu0 0.0
    %1015 = vmatpush2.msra.mxu0 0.0
    %1016 = vmatprep.subr.mxu0 0.0
    %1017 = vmatpush2.msra.mxu0 0.0
    %1018 = vmatprep.subr.mxu0 0.0
    %1019 = vmatpush2.msra.mxu0 0.0
    %1020 = vmatprep.subr.mxu0 0.0
    %1021 = vmatpush2.msra.mxu0 0.0
    %1022 = vmatprep.subr.mxu0 0.0
    %1023 = vmatpush2.msra.mxu0 0.0
    %1024 = vmatprep.subr.mxu0 0.0
    %1025 = vmatpush2.msra.mxu0 0.0
    %1026 = vmatprep.subr.mxu0 0.0
    %1027 = vmatpush2.msra.mxu0 0.0
    %1028 = vmatprep.subr.mxu0 0.0
    %1029 = vmatpush2.msra.mxu0 0.0
    %1030 = vmatprep.mubr.f32.mxu0 0.0
    %1031 = vmatmul.mubr.f32.gmra.mxu0 %v961
    %v1032 = vpop.f32.mrf.mxu0
    %v1033 = vadd.f32 %v959, %v1032
    %v1034 = vpop.f32.mrf.mxu0
    %1035 = vmatprep.mubr.f32.mxu0 0.0
    %1036 = vmatmul.mubr.f32.gmra.mxu0 %v964
    %v1037 = vpop.f32.mrf.mxu0
    %v1038 = vadd.f32 %v959, %v1037
    %v1039 = vpop.f32.mrf.mxu0
    %1040 = vdwg.mxu0
    %v1041 = vsel %vm158, %v1033, -inf
    %v1042 = vrot.slane %v1041, 4
    %v1043 = vmax.f32 %v1041, %v1042
    %v1044 = vrot.slane %v1043, 2
    %v1045 = vmax.f32 %v1043, %v1044
    %v1046 = vrot.slane %v1045, 1
    %v1047 = vmax.f32 %v1045, %v1046
    %v1048 = vsel %vm158, %v1038, -inf
    %v1049 = vrot.slane %v1048, 4
    %v1050 = vmax.f32 %v1048, %v1049
    %v1051 = vrot.slane %v1050, 2
    %v1052 = vmax.f32 %v1050, %v1051
    %v1053 = vrot.slane %v1052, 1
    %v1054 = vmax.f32 %v1052, %v1053
    %v1055 = vsub.f32 %v1033, %v1047
    %v1056 = vsub.f32 %v1038, %v1054
    %v1057 = vmul.f32 %v1055, 1.442695
    %v1058 = vpow.pop %v1057
    %v1059 = vmul.f32 %v1056, 1.442695
    %v1060 = vpow.pop %v1059
    %v1061 = vsel %vm158, %v1058, 0.0
    %v1062 = vrot.slane %v1061, 4
    %v1063 = vadd.f32 %v1061, %v1062
    %v1064 = vrot.slane %v1063, 2
    %v1065 = vadd.f32 %v1063, %v1064
    %v1066 = vrot.slane %v1065, 1
    %v1067 = vadd.f32 %v1065, %v1066
    %v1068 = vsel %vm158, %v1060, 0.0
    %v1069 = vrot.slane %v1068, 4
    %v1070 = vadd.f32 %v1068, %v1069
    %v1071 = vrot.slane %v1070, 2
    %v1072 = vadd.f32 %v1070, %v1071
    %v1073 = vrot.slane %v1072, 1
    %v1074 = vadd.f32 %v1072, %v1073
    %v1075 = vrcp.pop %v1067
    %v1076 = vmul.f32 %v1058, %v1075
    %v1077 = vrcp.pop %v1074
    %v1078 = vmul.f32 %v1060, %v1077
    %v1079 = vsel %vm158, %v1076, -inf
    %v1080 = vrot.slane %v1079, 4
    %v1081 = vmax.f32 %v1079, %v1080
    %v1082 = vrot.slane %v1081, 2
    %v1083 = vmax.f32 %v1081, %v1082
    %v1084 = vrot.slane %v1083, 1
    %v1085 = vmax.f32 %v1083, %v1084
    %v1086 = vsel %vm158, %v1078, -inf
    %v1087 = vrot.slane %v1086, 4
    %v1088 = vmax.f32 %v1086, %v1087
    %v1089 = vrot.slane %v1088, 2
    %v1090 = vmax.f32 %v1088, %v1089
    %v1091 = vrot.slane %v1090, 1
    %v1092 = vmax.f32 %v1090, %v1091
    %v1093 = vsub.f32 %v1085, 1e-07
    %v1094 = vsub.f32 %v1092, 1e-07
    %v1095 = vmin.f32 %v1093, 0.001
    %v1096 = vmin.f32 %v1094, 0.001
    %vm1097 = vcmp.gt.f32.partialorder %v1076, %v1095
    %vm1098 = vcmp.gt.f32.partialorder %v1078, %v1096
    %v1099 = vmul.f32 %v855, %v1076
    %v1100 = vmul.f32 %v856, %v1078
    %v1101 = vsel %vm1097, %v1099, -1e+30
    %v1102 = vsel %vm1098, %v1100, -1e+30
    %v1103 = vsel %vm158, %v1101, -inf
    %v1104 = vrot.slane %v1103, 4
    %v1105 = vmax.f32 %v1103, %v1104
    %v1106 = vrot.slane %v1105, 2
    %v1107 = vmax.f32 %v1105, %v1106
    %v1108 = vrot.slane %v1107, 1
    %v1109 = vmax.f32 %v1107, %v1108
    %v1110 = vsel %vm158, %v1102, -inf
    %v1111 = vrot.slane %v1110, 4
    %v1112 = vmax.f32 %v1110, %v1111
    %v1113 = vrot.slane %v1112, 2
    %v1114 = vmax.f32 %v1112, %v1113
    %v1115 = vrot.slane %v1114, 1
    %v1116 = vmax.f32 %v1114, %v1115
    %v1117 = vld [vmem:[#allocation7 + $0xe8] sm:$0xff]
    %v1118 = vld [vmem:[#allocation7 + $0xf0] sm:$0xff]
    %v1119 = vld [vmem:[#allocation7 + $0xf8] sm:$0xff]
    %v1120 = vld [vmem:[#allocation7 + $0x100] sm:$0xff]
    %v1121 = vld [vmem:[#allocation7 + $0x108] sm:$0xff]
    %v1122 = vld [vmem:[#allocation7 + $0x110] sm:$0xff]
    %v1123 = vld [vmem:[#allocation7 + $0x118] sm:$0xff]
    %v1124 = vld [vmem:[#allocation7 + $0x120] sm:$0xff]
    %vm1127 = vcmask 1041409
    %v1128 = vsel %vm1127, %v605, %v598
    %v1129 = vsel %vm158, %v1128, 0
    %1131 = vmatprep.subr.mxu0 0.0
    %1132 = vmatpush1.msra.mxu0 0.0
    %1133 = vmatprep.subr.mxu0 0.0
    %1134 = vmatpush1.msra.mxu0 0.0
    %1135 = vmatprep.subr.mxu0 0.0
    %1136 = vmatpush1.msra.mxu0 0.0
    %1137 = vmatprep.subr.mxu0 0.0
    %1138 = vmatpush1.msra.mxu0 0.0
    %1139 = vmatprep.subr.mxu0 0.0
    %1140 = vmatpush1.msra.mxu0 0.0
    %1141 = vmatprep.subr.mxu0 0.0
    %1142 = vmatpush1.msra.mxu0 0.0
    %1143 = vmatprep.subr.mxu0 0.0
    %1144 = vmatpush1.msra.mxu0 0.0
    %1145 = vmatprep.subr.mxu0 0.0
    %1146 = vmatpush1.msra.mxu0 0.0
    %1147 = vmatprep.subr.mxu0 0.0
    %1148 = vmatpush1.msra.mxu0 0.0
    %1149 = vmatprep.subr.mxu0 0.0
    %1150 = vmatpush1.msra.mxu0 0.0
    %1151 = vmatprep.subr.mxu0 0.0
    %1152 = vmatpush1.msra.mxu0 0.0
    %1153 = vmatprep.subr.mxu0 0.0
    %1154 = vmatpush1.msra.mxu0 0.0
    %1155 = vmatprep.subr.mxu0 0.0
    %1156 = vmatpush1.msra.mxu0 %v1124
    %1157 = vmatprep.subr.mxu0 0.0
    %1158 = vmatpush1.msra.mxu0 %v1123
    %1159 = vmatprep.subr.mxu0 0.0
    %1160 = vmatpush1.msra.mxu0 %v1122
    %1161 = vmatprep.subr.mxu0 0.0
    %1162 = vmatpush1.msra.mxu0 %v1121
    %1163 = vmatprep.subr.mxu0 0.0
    %1164 = vmatpush2.msra.mxu0 0.0
    %1165 = vmatprep.subr.mxu0 0.0
    %1166 = vmatpush2.msra.mxu0 0.0
    %1167 = vmatprep.subr.mxu0 0.0
    %1168 = vmatpush2.msra.mxu0 0.0
    %1169 = vmatprep.subr.mxu0 0.0
    %1170 = vmatpush2.msra.mxu0 0.0
    %1171 = vmatprep.subr.mxu0 0.0
    %1172 = vmatpush2.msra.mxu0 0.0
    %1173 = vmatprep.subr.mxu0 0.0
    %1174 = vmatpush2.msra.mxu0 0.0
    %1175 = vmatprep.subr.mxu0 0.0
    %1176 = vmatpush2.msra.mxu0 0.0
    %1177 = vmatprep.subr.mxu0 0.0
    %1178 = vmatpush2.msra.mxu0 0.0
    %1179 = vmatprep.subr.mxu0 0.0
    %1180 = vmatpush2.msra.mxu0 0.0
    %1181 = vmatprep.subr.mxu0 0.0
    %1182 = vmatpush2.msra.mxu0 0.0
    %1183 = vmatprep.subr.mxu0 0.0
    %1184 = vmatpush2.msra.mxu0 0.0
    %1185 = vmatprep.subr.mxu0 0.0
    %1186 = vmatpush2.msra.mxu0 0.0
    %1187 = vmatprep.subr.mxu0 0.0
    %1188 = vmatpush2.msra.mxu0 0.0
    %1189 = vmatprep.subr.mxu0 0.0
    %1190 = vmatpush2.msra.mxu0 0.0
    %1191 = vmatprep.subr.mxu0 0.0
    %1192 = vmatpush2.msra.mxu0 0.0
    %1193 = vmatprep.subr.mxu0 0.0
    %1194 = vmatpush2.msra.mxu0 0.0
    %1195 = vmatprep.mubr.f32.mxu0 0.0
    %1196 = vmatmul.mubr.f32.gmra.mxu0 %v1129
    %v1197 = vpop.f32.mrf.mxu0
    %v1198 = vadd.f32 0.0, %v1197
    %v1199 = vpop.f32.mrf.mxu0
    %1200 = vdwg.mxu0
    %v1203 = vsel %vm1127, %v340, %v333
    %v1204 = vsel %vm158, %v1203, 0
    %1206 = vmatprep.subr.mxu0 0.0
    %1207 = vmatpush1.msra.mxu0 0.0
    %1208 = vmatprep.subr.mxu0 0.0
    %1209 = vmatpush1.msra.mxu0 0.0
    %1210 = vmatprep.subr.mxu0 0.0
    %1211 = vmatpush1.msra.mxu0 0.0
    %1212 = vmatprep.subr.mxu0 0.0
    %1213 = vmatpush1.msra.mxu0 0.0
    %1214 = vmatprep.subr.mxu0 0.0
    %1215 = vmatpush1.msra.mxu0 0.0
    %1216 = vmatprep.subr.mxu0 0.0
    %1217 = vmatpush1.msra.mxu0 0.0
    %1218 = vmatprep.subr.mxu0 0.0
    %1219 = vmatpush1.msra.mxu0 0.0
    %1220 = vmatprep.subr.mxu0 0.0
    %1221 = vmatpush1.msra.mxu0 0.0
    %1222 = vmatprep.subr.mxu0 0.0
    %1223 = vmatpush1.msra.mxu0 0.0
    %1224 = vmatprep.subr.mxu0 0.0
    %1225 = vmatpush1.msra.mxu0 0.0
    %1226 = vmatprep.subr.mxu0 0.0
    %1227 = vmatpush1.msra.mxu0 0.0
    %1228 = vmatprep.subr.mxu0 0.0
    %1229 = vmatpush1.msra.mxu0 0.0
    %1230 = vmatprep.subr.mxu0 0.0
    %1231 = vmatpush1.msra.mxu0 %v1120
    %1232 = vmatprep.subr.mxu0 0.0
    %1233 = vmatpush1.msra.mxu0 %v1119
    %1234 = vmatprep.subr.mxu0 0.0
    %1235 = vmatpush1.msra.mxu0 %v1118
    %1236 = vmatprep.subr.mxu0 0.0
    %1237 = vmatpush1.msra.mxu0 %v1117
    %1238 = vmatprep.subr.mxu0 0.0
    %1239 = vmatpush2.msra.mxu0 0.0
    %1240 = vmatprep.subr.mxu0 0.0
    %1241 = vmatpush2.msra.mxu0 0.0
    %1242 = vmatprep.subr.mxu0 0.0
    %1243 = vmatpush2.msra.mxu0 0.0
    %1244 = vmatprep.subr.mxu0 0.0
    %1245 = vmatpush2.msra.mxu0 0.0
    %1246 = vmatprep.subr.mxu0 0.0
    %1247 = vmatpush2.msra.mxu0 0.0
    %1248 = vmatprep.subr.mxu0 0.0
    %1249 = vmatpush2.msra.mxu0 0.0
    %1250 = vmatprep.subr.mxu0 0.0
    %1251 = vmatpush2.msra.mxu0 0.0
    %1252 = vmatprep.subr.mxu0 0.0
    %1253 = vmatpush2.msra.mxu0 0.0
    %1254 = vmatprep.subr.mxu0 0.0
    %1255 = vmatpush2.msra.mxu0 0.0
    %1256 = vmatprep.subr.mxu0 0.0
    %1257 = vmatpush2.msra.mxu0 0.0
    %1258 = vmatprep.subr.mxu0 0.0
    %1259 = vmatpush2.msra.mxu0 0.0
    %1260 = vmatprep.subr.mxu0 0.0
    %1261 = vmatpush2.msra.mxu0 0.0
    %1262 = vmatprep.subr.mxu0 0.0
    %1263 = vmatpush2.msra.mxu0 0.0
    %1264 = vmatprep.subr.mxu0 0.0
    %1265 = vmatpush2.msra.mxu0 0.0
    %1266 = vmatprep.subr.mxu0 0.0
    %1267 = vmatpush2.msra.mxu0 0.0
    %1268 = vmatprep.subr.mxu0 0.0
    %1269 = vmatpush2.msra.mxu0 0.0
    %1270 = vmatprep.mubr.f32.mxu0 0.0
    %1271 = vmatmul.mubr.f32.gmra.mxu0 %v1204
    %v1272 = vpop.f32.mrf.mxu0
    %v1273 = vadd.f32 %v1198, %v1272
    %v1274 = vpop.f32.mrf.mxu0
    %1275 = vdwg.mxu0
    %v1276 = vld [vmem:[#allocation7 + $0x128] sm:$0xff]
    %v1277 = vld [vmem:[#allocation7 + $0x130] sm:$0xff]
    %v1278 = vld [vmem:[#allocation7 + $0x138] sm:$0xff]
    %v1279 = vld [vmem:[#allocation7 + $0x140] sm:$0xff]
    %v1282 = vsel %vm1127, %v870, %v863
    %v1283 = vsel %vm158, %v1282, 0
    %1285 = vmatprep.subr.mxu0 0.0
    %1286 = vmatpush1.msra.mxu0 0.0
    %1287 = vmatprep.subr.mxu0 0.0
    %1288 = vmatpush1.msra.mxu0 0.0
    %1289 = vmatprep.subr.mxu0 0.0
    %1290 = vmatpush1.msra.mxu0 0.0
    %1291 = vmatprep.subr.mxu0 0.0
    %1292 = vmatpush1.msra.mxu0 0.0
    %1293 = vmatprep.subr.mxu0 0.0
    %1294 = vmatpush1.msra.mxu0 0.0
    %1295 = vmatprep.subr.mxu0 0.0
    %1296 = vmatpush1.msra.mxu0 0.0
    %1297 = vmatprep.subr.mxu0 0.0
    %1298 = vmatpush1.msra.mxu0 0.0
    %1299 = vmatprep.subr.mxu0 0.0
    %1300 = vmatpush1.msra.mxu0 0.0
    %1301 = vmatprep.subr.mxu0 0.0
    %1302 = vmatpush1.msra.mxu0 0.0
    %1303 = vmatprep.subr.mxu0 0.0
    %1304 = vmatpush1.msra.mxu0 0.0
    %1305 = vmatprep.subr.mxu0 0.0
    %1306 = vmatpush1.msra.mxu0 0.0
    %1307 = vmatprep.subr.mxu0 0.0
    %1308 = vmatpush1.msra.mxu0 0.0
    %1309 = vmatprep.subr.mxu0 0.0
    %1310 = vmatpush1.msra.mxu0 %v1279
    %1311 = vmatprep.subr.mxu0 0.0
    %1312 = vmatpush1.msra.mxu0 %v1278
    %1313 = vmatprep.subr.mxu0 0.0
    %1314 = vmatpush1.msra.mxu0 %v1277
    %1315 = vmatprep.subr.mxu0 0.0
    %1316 = vmatpush1.msra.mxu0 %v1276
    %1317 = vmatprep.subr.mxu0 0.0
    %1318 = vmatpush2.msra.mxu0 0.0
    %1319 = vmatprep.subr.mxu0 0.0
    %1320 = vmatpush2.msra.mxu0 0.0
    %1321 = vmatprep.subr.mxu0 0.0
    %1322 = vmatpush2.msra.mxu0 0.0
    %1323 = vmatprep.subr.mxu0 0.0
    %1324 = vmatpush2.msra.mxu0 0.0
    %1325 = vmatprep.subr.mxu0 0.0
    %1326 = vmatpush2.msra.mxu0 0.0
    %1327 = vmatprep.subr.mxu0 0.0
    %1328 = vmatpush2.msra.mxu0 0.0
    %1329 = vmatprep.subr.mxu0 0.0
    %1330 = vmatpush2.msra.mxu0 0.0
    %1331 = vmatprep.subr.mxu0 0.0
    %1332 = vmatpush2.msra.mxu0 0.0
    %1333 = vmatprep.subr.mxu0 0.0
    %1334 = vmatpush2.msra.mxu0 0.0
    %1335 = vmatprep.subr.mxu0 0.0
    %1336 = vmatpush2.msra.mxu0 0.0
    %1337 = vmatprep.subr.mxu0 0.0
    %1338 = vmatpush2.msra.mxu0 0.0
    %1339 = vmatprep.subr.mxu0 0.0
    %1340 = vmatpush2.msra.mxu0 0.0
    %1341 = vmatprep.subr.mxu0 0.0
    %1342 = vmatpush2.msra.mxu0 0.0
    %1343 = vmatprep.subr.mxu0 0.0
    %1344 = vmatpush2.msra.mxu0 0.0
    %1345 = vmatprep.subr.mxu0 0.0
    %1346 = vmatpush2.msra.mxu0 0.0
    %1347 = vmatprep.subr.mxu0 0.0
    %1348 = vmatpush2.msra.mxu0 0.0
    %1349 = vmatprep.mubr.f32.mxu0 0.0
    %1350 = vmatmul.mubr.f32.gmra.mxu0 %v1283
    %v1351 = vpop.f32.mrf.mxu0
    %v1352 = vadd.f32 0.0, %v1351
    %v1353 = vpop.f32.mrf.mxu0
    %1354 = vdwg.mxu0
    %v1355 = vadd.f32 %v1273, %v1352
    %v1356 = vld [vmem:[#allocation7 + $0x148] sm:$0xff]
    %v1357 = vld [vmem:[#allocation7 + $0x150] sm:$0xff]
    %v1358 = vld [vmem:[#allocation7 + $0x158] sm:$0xff]
    %v1359 = vld [vmem:[#allocation7 + $0x160] sm:$0xff]
    %v1362 = vsel %vm1127, %v1116, %v1109
    %v1363 = vsel %vm158, %v1362, 0
    %1365 = vmatprep.subr.mxu0 0.0
    %1366 = vmatpush1.msra.mxu0 0.0
    %1367 = vmatprep.subr.mxu0 0.0
    %1368 = vmatpush1.msra.mxu0 0.0
    %1369 = vmatprep.subr.mxu0 0.0
    %1370 = vmatpush1.msra.mxu0 0.0
    %1371 = vmatprep.subr.mxu0 0.0
    %1372 = vmatpush1.msra.mxu0 0.0
    %1373 = vmatprep.subr.mxu0 0.0
    %1374 = vmatpush1.msra.mxu0 0.0
    %1375 = vmatprep.subr.mxu0 0.0
    %1376 = vmatpush1.msra.mxu0 0.0
    %1377 = vmatprep.subr.mxu0 0.0
    %1378 = vmatpush1.msra.mxu0 0.0
    %1379 = vmatprep.subr.mxu0 0.0
    %1380 = vmatpush1.msra.mxu0 0.0
    %1381 = vmatprep.subr.mxu0 0.0
    %1382 = vmatpush1.msra.mxu0 0.0
    %1383 = vmatprep.subr.mxu0 0.0
    %1384 = vmatpush1.msra.mxu0 0.0
    %1385 = vmatprep.subr.mxu0 0.0
    %1386 = vmatpush1.msra.mxu0 0.0
    %1387 = vmatprep.subr.mxu0 0.0
    %1388 = vmatpush1.msra.mxu0 0.0
    %1389 = vmatprep.subr.mxu0 0.0
    %1390 = vmatpush1.msra.mxu0 %v1359
    %1391 = vmatprep.subr.mxu0 0.0
    %1392 = vmatpush1.msra.mxu0 %v1358
    %1393 = vmatprep.subr.mxu0 0.0
    %1394 = vmatpush1.msra.mxu0 %v1357
    %1395 = vmatprep.subr.mxu0 0.0
    %1396 = vmatpush1.msra.mxu0 %v1356
    %1397 = vmatprep.subr.mxu0 0.0
    %1398 = vmatpush2.msra.mxu0 0.0
    %1399 = vmatprep.subr.mxu0 0.0
    %1400 = vmatpush2.msra.mxu0 0.0
    %1401 = vmatprep.subr.mxu0 0.0
    %1402 = vmatpush2.msra.mxu0 0.0
    %1403 = vmatprep.subr.mxu0 0.0
    %1404 = vmatpush2.msra.mxu0 0.0
    %1405 = vmatprep.subr.mxu0 0.0
    %1406 = vmatpush2.msra.mxu0 0.0
    %1407 = vmatprep.subr.mxu0 0.0
    %1408 = vmatpush2.msra.mxu0 0.0
    %1409 = vmatprep.subr.mxu0 0.0
    %1410 = vmatpush2.msra.mxu0 0.0
    %1411 = vmatprep.subr.mxu0 0.0
    %1412 = vmatpush2.msra.mxu0 0.0
    %1413 = vmatprep.subr.mxu0 0.0
    %1414 = vmatpush2.msra.mxu0 0.0
    %1415 = vmatprep.subr.mxu0 0.0
    %1416 = vmatpush2.msra.mxu0 0.0
    %1417 = vmatprep.subr.mxu0 0.0
    %1418 = vmatpush2.msra.mxu0 0.0
    %1419 = vmatprep.subr.mxu0 0.0
    %1420 = vmatpush2.msra.mxu0 0.0
    %1421 = vmatprep.subr.mxu0 0.0
    %1422 = vmatpush2.msra.mxu0 0.0
    %1423 = vmatprep.subr.mxu0 0.0
    %1424 = vmatpush2.msra.mxu0 0.0
    %1425 = vmatprep.subr.mxu0 0.0
    %1426 = vmatpush2.msra.mxu0 0.0
    %1427 = vmatprep.subr.mxu0 0.0
    %1428 = vmatpush2.msra.mxu0 0.0
    %1429 = vmatprep.mubr.f32.mxu0 0.0
    %1430 = vmatmul.mubr.f32.gmra.mxu0 %v1363
    %v1431 = vpop.f32.mrf.mxu0
    %v1432 = vadd.f32 0.0, %v1431
    %v1433 = vpop.f32.mrf.mxu0
    %1434 = vdwg.mxu0
    %v1435 = vadd.f32 %v1355, %v1432
    %v1436 = vlaneseq
    %v1437 = vshrl.u32 %v1436, 7
    %v1438 = vsub.s32 4, %v1437
    %v1439 = vrot.slane %v67, %v1438
    %v1440 = vadd.f32 %v1435, %v1439
    %vm1441 = vcmask 1041408
    %v1442 = vsel %vm1441, %v1440, 0.0
    %v1443 = vrot.slane %v1442, 4
    %v1444 = vadd.f32 %v1442, %v1443
    %v1445 = vrot.slane %v1444, 2
    %v1446 = vadd.f32 %v1444, %v1445
    %v1447 = vrot.slane %v1446, 1
    %v1448 = vadd.f32 %v1446, %v1447
    %v1449 = vrcp.pop 2.0
    %v1450 = vmul.f32 %v1448, %v1449
    %v1451 = vsub.f32 %v1440, %v1450
    %v1452 = vmul.f32 %v1451, %v1451
    %v1453 = vsel %vm1441, %v1452, 0.0
    %v1454 = vrot.slane %v1453, 4
    %v1455 = vadd.f32 %v1453, %v1454
    %v1456 = vrot.slane %v1455, 2
    %v1457 = vadd.f32 %v1455, %v1456
    %v1458 = vrot.slane %v1457, 1
    %v1459 = vadd.f32 %v1457, %v1458
    %v1460 = vmul.f32 %v1459, %v1449
    %v1461 = vadd.f32 %v1460, 1e-05
    %v1462 = vrsqrt.pop %v1461
    %v1463 = vmul.f32 %v1451, %v1462
    %v1464 = vlaneseq
    %v1465 = vshrl.u32 %v1464, 7
    %v1466 = vsub.s32 5, %v1465
    %v1467 = vrot.slane %v67, %v1466
    %v1468 = vmul.f32 %v1463, %v1467
    %v1469 = vlaneseq
    %v1470 = vshrl.u32 %v1469, 7
    %v1471 = vsub.s32 6, %v1470
    %v1472 = vrot.slane %v67, %v1471
    %v1473 = vadd.f32 %v1468, %v1472
    %v1474 = vmax.f32 %v1473, 0.0
    %v1475 = vld [vmem:[#allocation7 + $0x168] sm:$0xff]
    %v1476 = vld [vmem:[#allocation7 + $0x170] sm:$0xff]
    %v1477 = vld [vmem:[#allocation7 + $0x178] sm:$0xff]
    %v1478 = vld [vmem:[#allocation7 + $0x180] sm:$0xff]
    %v1479 = vld [vmem:[#allocation7 + $0x188] sm:$0xff]
    %v1480 = vld [vmem:[#allocation7 + $0x190] sm:$0xff]
    %v1481 = vld [vmem:[#allocation7 + $0x198] sm:$0xff]
    %v1482 = vld [vmem:[#allocation7 + $0x1a0] sm:$0xff]
    %v1483 = vld [vmem:[#allocation7 + $0x1a8] sm:$0xff]
    %v1484 = vld [vmem:[#allocation7 + $0x1b0] sm:$0xff]
    %v1485 = vld [vmem:[#allocation7 + $0x1b8] sm:$0xff]
    %v1486 = vld [vmem:[#allocation7 + $0x1c0] sm:$0xff]
    %v1487 = vld [vmem:[#allocation7 + $0x1c8] sm:$0xff]
    %v1488 = vld [vmem:[#allocation7 + $0x1d0] sm:$0xff]
    %v1489 = vld [vmem:[#allocation7 + $0x1d8] sm:$0xff]
    %v1490 = vld [vmem:[#allocation7 + $0x1e0] sm:$0xff]
    %v1491 = vlaneseq
    %v1492 = vshrl.u32 %v1491, 7
    %v1493 = vsub.s32 7, %v1492
    %v1494 = vrot.slane %v67, %v1493
    %1495 = vmatprep.subr.mxu0 0.0
    %1496 = vmatpush1.msra.mxu0 %v1490
    %1497 = vmatprep.subr.mxu0 0.0
    %1498 = vmatpush1.msra.mxu0 %v1489
    %1499 = vmatprep.subr.mxu0 0.0
    %1500 = vmatpush1.msra.mxu0 %v1488
    %1501 = vmatprep.subr.mxu0 0.0
    %1502 = vmatpush1.msra.mxu0 %v1487
    %1503 = vmatprep.subr.mxu0 0.0
    %1504 = vmatpush1.msra.mxu0 %v1486
    %1505 = vmatprep.subr.mxu0 0.0
    %1506 = vmatpush1.msra.mxu0 %v1485
    %1507 = vmatprep.subr.mxu0 0.0
    %1508 = vmatpush1.msra.mxu0 %v1484
    %1509 = vmatprep.subr.mxu0 0.0
    %1510 = vmatpush1.msra.mxu0 %v1483
    %1511 = vmatprep.subr.mxu0 0.0
    %1512 = vmatpush1.msra.mxu0 %v1482
    %1513 = vmatprep.subr.mxu0 0.0
    %1514 = vmatpush1.msra.mxu0 %v1481
    %1515 = vmatprep.subr.mxu0 0.0
    %1516 = vmatpush1.msra.mxu0 %v1480
    %1517 = vmatprep.subr.mxu0 0.0
    %1518 = vmatpush1.msra.mxu0 %v1479
    %1519 = vmatprep.subr.mxu0 0.0
    %1520 = vmatpush1.msra.mxu0 %v1478
    %1521 = vmatprep.subr.mxu0 0.0
    %1522 = vmatpush1.msra.mxu0 %v1477
    %1523 = vmatprep.subr.mxu0 0.0
    %1524 = vmatpush1.msra.mxu0 %v1476
    %1525 = vmatprep.subr.mxu0 0.0
    %1526 = vmatpush1.msra.mxu0 %v1475
    %1527 = vmatprep.subr.mxu0 0.0
    %1528 = vmatpush2.msra.mxu0 0.0
    %1529 = vmatprep.subr.mxu0 0.0
    %1530 = vmatpush2.msra.mxu0 0.0
    %1531 = vmatprep.subr.mxu0 0.0
    %1532 = vmatpush2.msra.mxu0 0.0
    %1533 = vmatprep.subr.mxu0 0.0
    %1534 = vmatpush2.msra.mxu0 0.0
    %1535 = vmatprep.subr.mxu0 0.0
    %1536 = vmatpush2.msra.mxu0 0.0
    %1537 = vmatprep.subr.mxu0 0.0
    %1538 = vmatpush2.msra.mxu0 0.0
    %1539 = vmatprep.subr.mxu0 0.0
    %1540 = vmatpush2.msra.mxu0 0.0
    %1541 = vmatprep.subr.mxu0 0.0
    %1542 = vmatpush2.msra.mxu0 0.0
    %1543 = vmatprep.subr.mxu0 0.0
    %1544 = vmatpush2.msra.mxu0 0.0
    %1545 = vmatprep.subr.mxu0 0.0
    %1546 = vmatpush2.msra.mxu0 0.0
    %1547 = vmatprep.subr.mxu0 0.0
    %1548 = vmatpush2.msra.mxu0 0.0
    %1549 = vmatprep.subr.mxu0 0.0
    %1550 = vmatpush2.msra.mxu0 0.0
    %1551 = vmatprep.subr.mxu0 0.0
    %1552 = vmatpush2.msra.mxu0 0.0
    %1553 = vmatprep.subr.mxu0 0.0
    %1554 = vmatpush2.msra.mxu0 0.0
    %1555 = vmatprep.subr.mxu0 0.0
    %1556 = vmatpush2.msra.mxu0 0.0
    %1557 = vmatprep.subr.mxu0 0.0
    %1558 = vmatpush2.msra.mxu0 0.0
    %1559 = vmatprep.mubr.f32.mxu0 0.0
    %1560 = vmatmul.mubr.f32.gmra.mxu0 %v1474
    %v1561 = vpop.f32.mrf.mxu0
    %v1562 = vadd.f32 %v1494, %v1561
    %v1563 = vpop.f32.mrf.mxu0
    %1564 = vdwg.mxu0
    %1565 = vst [vmem:[#allocation8] sm:$0x3] %v1562
    %v1566 = vsel %vm1441, %v1562, -inf
    %1567 = vmax.xlane.f32.xlu0 %v1566
    %v1568 = vpop.xlane.xlu0 %1567
    %v1569 = vsub.f32 %v1562, %v1568
    %v1570 = vmul.f32 %v1569, 1.442695
    %v1571 = vpow.pop %v1570
    %v1572 = vsel %vm1441, %v1571, 0.0
    %1573 = vadd.xlane.f32.xlu0 %v1572
    %v1574 = vpop.xlane.xlu0 %1573
    %v1575 = vlog2.pop %v1574
    %v1576 = vmul.f32 %v1575, 0.6931472
    %v1577 = vadd.f32 %v1576, %v1568
    %v1578 = vmul.f32 %v66, %v1562
    %v1579 = vsel %vm1441, %v1578, 0.0
    %1580 = vadd.xlane.f32.xlu0 %v1579
    %v1581 = vpop.xlane.xlu0 %1580
    %v1582 = vsub.f32 %v1577, %v1581
    %v1583 = vsel %vm1441, %v1582, 0.0
    %v1584 = vrot.slane %v1583, 4
    %v1585 = vadd.f32 %v1583, %v1584
    %v1586 = vrot.slane %v1585, 2
    %v1587 = vadd.f32 %v1585, %v1586
    %v1588 = vrot.slane %v1587, 1
    %v1589 = vadd.f32 %v1587, %v1588
    %v1590 = vmul.f32 %v1589, %v1449
    %vm1591 = vcmask 0
    %1592 = vst.msk [vmem:[#allocation9] sm:$0x1] %vm1591, %v1590
    // Predicated region
    $region26: #{tpu_custom_call.1} parent=1 // pred_check
      _
    $region27: #{tpu_custom_call.1} parent=1 // pred_check_branch
      %1594 = sbr.rel (0) target = $region29
    $region28: #{tpu_custom_call.1} parent=1 // pred_region
      %s1596 = ssub.s32 32, 32
      %1597 = vsyncadd [#allocation4], %s1596
      %s1599 = sshll.u32 [#allocation8], 4
      %s1600 = int_to_ptr.vmem [resolvable:$true] %s1599
      %1602 = dma.vmem_to_hbm [thread:$0]  %s1600, 32, %s3, [#allocation4]
    $region29: #{tpu_custom_call.1} parent=1 // pred_fallthru
      _
    // Predicated region
    $region30: #{tpu_custom_call.1} parent=1 // pred_check
      _
    $region31: #{tpu_custom_call.1} parent=1 // pred_check_branch
      %1604 = sbr.rel (0) target = $region33
    $region32: #{tpu_custom_call.1} parent=1 // pred_region
      %s1606 = ssub.s32 16, 16
      %1607 = vsyncadd [#allocation10], %s1606
      %s1609 = sshll.u32 [#allocation9], 4
      %s1610 = int_to_ptr.vmem [resolvable:$true] %s1609
      %1612 = dma.vmem_to_hbm [thread:$0]  %s1610, 16, %s4, [#allocation10]
    $region33: #{tpu_custom_call.1} parent=1 // pred_fallthru
      _
    // Predicated region
    $region34: #{tpu_custom_call.1} parent=1 // pred_check
      _
    $region35: #{tpu_custom_call.1} parent=1 // pred_check_branch
      %1614 = sbr.rel (0) target = $region37
    $region36: #{tpu_custom_call.1} parent=1 // pred_region
      %1615 = dma.done [#allocation4], 32
    $region37: #{tpu_custom_call.1} parent=1 // pred_fallthru
      _
    // Predicated region
    $region38: #{tpu_custom_call.1} parent=1 // pred_check
      _
    $region39: #{tpu_custom_call.1} parent=1 // pred_check_branch
      %1617 = sbr.rel (0) target = $region41
    $region40: #{tpu_custom_call.1} parent=1 // pred_region
      %1618 = dma.done [#allocation10], 16
    $region41: #{tpu_custom_call.1} parent=1 // pred_fallthru
      _
    %1619 = vsyncpa [#allocation3], 1
    %1620 = vsyncpa [#allocation6], 1
    %1621 = vsyncpa [#allocation4], 1
    %1622 = vsyncpa [#allocation10], 1

</llo_original>
